<compile_context>
chip_gen: v7x
topology: tpu7x:2x2x1
jax: 0.10.0
libtpu: 0.0.40
codegen_flags: <defaults>
</compile_context>

<pallas_src>
import math

import jax
import jax.numpy as jnp
from jax.experimental import pallas as pl
from jax.experimental.pallas import tpu as pltpu


def _softsign(v):
    return v / (1.0 + jnp.abs(v))


def trace_lstm_seq_kernel(xp_ref, s0_ref, ws_ref, w2e_ref, w2r_ref,
                          out_ref, state_ref):
    f32 = jnp.float32
    H = w2e_ref.shape[0]
    wdt = ws_ref.dtype

    # Seed the carried [h, c, e, r] state slab on the first timestep.
    @pl.when(pl.program_id(0) == 0)
    def _():
        state_ref[...] = s0_ref[...]

    state = state_ref[...]                                      # (B, 4H) f32
    c = state[:, 1 * H:2 * H]

    # Fused matmul #1: all state contributions of every used gate in one MXU
    # issue; the x contribution (+ bias) was hoisted into xp outside.
    pre = xp_ref[0] + jnp.dot(state.astype(wdt), ws_ref[...],
                              preferred_element_type=f32)        # (B, 6H)

    forget_gate = jax.nn.sigmoid(pre[:, 0 * H:1 * H])
    input_gate = jax.nn.sigmoid(pre[:, 1 * H:2 * H])
    c_new = forget_gate * c + input_gate * _softsign(pre[:, 2 * H:3 * H])
    e_new = _softsign(pre[:, 3 * H:4 * H])
    r_new = _softsign(pre[:, 4 * H:5 * H])

    # Output gate: two small dots, no (B, 2H) concat on the critical path.
    og_pre = (pre[:, 5 * H:6 * H]
              + jnp.dot(e_new.astype(wdt), w2e_ref[...],
                        preferred_element_type=f32)
              + jnp.dot(r_new.astype(wdt), w2r_ref[...],
                        preferred_element_type=f32))
    h_new = jax.nn.sigmoid(og_pre) * _softsign(c_new)

    # Lane-aligned slice stores (no concat temp).  Slab order [h, c, e, r]
    # is exactly next step's matmul LHS, so the state never leaves VMEM.
    state_ref[:, 0 * H:1 * H] = h_new
    state_ref[:, 1 * H:2 * H] = c_new
    state_ref[:, 2 * H:3 * H] = e_new
    state_ref[:, 3 * H:4 * H] = r_new
    out_ref[0] = state_ref[...]


def pack_params(params, input_size, hidden_size, weight_dtype=jnp.bfloat16):
    """One-time packing of module weights into the fused-kernel layout.

    Splits the old fused W1 into x-rows (hoisted out of the recurrence, kept
    f32) and state-rows (kept VMEM-resident inside the kernel, cast to
    `weight_dtype`).  The bias is folded into the x-projection.  The unused
    6th gate of w_ii/w_hh/bias and weight_aa are dropped entirely.
    """
    H = hidden_size
    f32 = jnp.float32
    w_ii, w_hh = params["w_ii"], params["w_hh"]
    w_cc, w_ee, w_rr = params["w_cc"], params["w_ee"], params["w_rr"]
    bias = params["b_ih"] + params["b_hh"]

    wii = lambda k: w_ii[:, k * H:(k + 1) * H]
    whh = lambda k: w_hh[:, k * H:(k + 1) * H]
    wcc = lambda k: w_cc[:, k * H:(k + 1) * H]
    wee = lambda k: w_ee[:, k * H:(k + 1) * H]
    wrr = lambda k: w_rr[:, k * H:(k + 1) * H]
    z = jnp.zeros((H, H), f32)

    # x-rows; column blocks = [forget, input, cell_cand, e_pre, r_pre, out_pre]
    wx = jnp.concatenate(
        [wii(0), wii(1), wii(2), wii(3), wii(3), wii(4)], axis=1)   # (I, 6H)
    b = lambda k: bias[k * H:(k + 1) * H]
    b1 = jnp.concatenate([b(0), b(1), b(2), b(3), b(3), b(4)])      # (6H,)

    # state-rows; LHS order [h, c, e, r]
    cols = [
        jnp.concatenate([whh(0), wcc(0), wee(0), wrr(0)], axis=0),
        jnp.concatenate([whh(1), wcc(1), wee(1), wrr(1)], axis=0),
        jnp.concatenate([whh(2), z, z, z], axis=0),
        jnp.concatenate([whh(3), z, wee(2), z], axis=0),
        jnp.concatenate([whh(3), z, z, wrr(2)], axis=0),
        jnp.concatenate([whh(4), z, z, z], axis=0),
    ]
    ws = jnp.concatenate(cols, axis=1)                              # (4H, 6H)

    w2e = wcc(2) + wee(3)          # shared LHS e_new   (H, H)
    w2r = wrr(3)                   # LHS r_new          (H, H)

    return {"wx": wx.astype(f32), "b1": b1.astype(f32),
            "ws": ws.astype(weight_dtype),
            "w2e": w2e.astype(weight_dtype),
            "w2r": w2r.astype(weight_dtype)}


def trace_lstm_seq(x_seq, h0, c0, e0, r0, packed):
    """Runs the cell over a whole sequence inside ONE pallas_call.

    Returns the (T, B, 4H) per-step state slab laid out as [h, c, e, r].
    """
    T, B, _ = x_seq.shape
    H = h0.shape[1]
    f32 = jnp.float32

    # Hoisted x-projection for the whole sequence (bias folded in): one large,
    # well-shaped matmul outside the recurrence.
    xp = jnp.einsum("tbi,ig->tbg", x_seq, packed["wx"],
                    precision=jax.lax.Precision.HIGHEST) + packed["b1"]

    s0 = jnp.concatenate([h0, c0, e0, r0], axis=1)                  # (B, 4H)
    ws, w2e, w2r = packed["ws"], packed["w2e"], packed["w2r"]

    flops = T * (2 * B * (4 * H) * (6 * H) + 2 * 2 * B * H * H)
    wbytes = (ws.size * ws.dtype.itemsize + w2e.size * w2e.dtype.itemsize
              + w2r.size * w2r.dtype.itemsize)
    bytes_accessed = 4 * (xp.size + s0.size + T * B * 4 * H) + wbytes

    grid_spec = pltpu.PrefetchScalarGridSpec(
        num_scalar_prefetch=0,
        grid=(T,),
        in_specs=[
            pl.BlockSpec((1, B, 6 * H), lambda t: (t, 0, 0)),   # xp_t streamed
            pl.BlockSpec((B, 4 * H), lambda t: (0, 0)),         # init state
            pl.BlockSpec((4 * H, 6 * H), lambda t: (0, 0)),     # ws, resident
            pl.BlockSpec((H, H), lambda t: (0, 0)),             # w2e, resident
            pl.BlockSpec((H, H), lambda t: (0, 0)),             # w2r, resident
        ],
        out_specs=pl.BlockSpec((1, B, 4 * H), lambda t: (t, 0, 0)),
        scratch_shapes=[pltpu.VMEM((B, 4 * H), f32)],
    )

    # TODO(synk): if batch grows to >= a few MXU row tiles, add a leading
    # "parallel" grid axis over batch tiles so v7x's second TensorCore is used.
    return pl.pallas_call(
        trace_lstm_seq_kernel,
        out_shape=jax.ShapeDtypeStruct((T, B, 4 * H), f32),
        grid_spec=grid_spec,
        compiler_params=pltpu.CompilerParams(
            dimension_semantics=("arbitrary",)),
        cost_estimate=pl.CostEstimate(
            flops=flops, transcendentals=7 * T * B * H,
            bytes_accessed=bytes_accessed),
    )(xp, s0, ws, w2e, w2r)


def trace_lstm_cell(x, h, c, e, r, packed):
    """Module-exact single-step API (thin wrapper: sequence kernel with T=1)."""
    H = h.shape[1]
    out = trace_lstm_seq(x[None], h, c, e, r, packed)[0]
    return (out[:, 0 * H:1 * H], out[:, 1 * H:2 * H],
            out[:, 2 * H:3 * H], out[:, 3 * H:4 * H])


def trace_lstm_cell_ref(x, h, c, e, r, p):
    """Pure-JAX reference mirroring the PyTorch forward exactly (f32)."""
    H = h.shape[1]
    mm = lambda a, b: jnp.dot(a, b, precision=jax.lax.Precision.HIGHEST)
    bias = p["b_hh"] + p["b_ih"]
    wb_full = mm(x, p["w_ii"]) + mm(h, p["w_hh"]) + bias
    wb = [wb_full[:, k * H:(k + 1) * H] for k in range(6)]
    wc = [p["w_cc"][:, k * H:(k + 1) * H] for k in range(3)]
    we = [p["w_ee"][:, k * H:(k + 1) * H] for k in range(4)]
    wr = [p["w_rr"][:, k * H:(k + 1) * H] for k in range(4)]
    ss = lambda v: v / (1.0 + jnp.abs(v))
    sig = jax.nn.sigmoid
    forget = sig(wb[0] + mm(c, wc[0]) + mm(e, we[0]) + mm(r, wr[0]))
    inp = sig(wb[1] + mm(c, wc[1]) + mm(e, we[1]) + mm(r, wr[1]))
    c2 = forget * c + inp * ss(wb[2])
    e2 = ss(wb[3] + mm(e, we[2]))
    r2 = ss(wb[3] + mm(r, wr[2]))
    out = sig(wb[4] + mm(e2, wc[2]) + mm(e2, we[3]) + mm(r2, wr[3]))
    h2 = out * ss(c2)
    return h2, c2, e2, r2


def trace_lstm_seq_ref(x_seq, h, c, e, r, p):
    slabs = []
    for t in range(x_seq.shape[0]):
        h, c, e, r = trace_lstm_cell_ref(x_seq[t], h, c, e, r, p)
        slabs.append(jnp.concatenate([h, c, e, r], axis=1))
    return jnp.stack(slabs, axis=0)


def init_params(key, input_size, hidden_size):
    stdv = 1.0 / math.sqrt(hidden_size)
    shapes = {
        "w_ii": (input_size, 6 * hidden_size),
        "w_hh": (hidden_size, 6 * hidden_size),
        "w_cc": (hidden_size, 3 * hidden_size),
        "w_ee": (hidden_size, 4 * hidden_size),
        "w_rr": (hidden_size, 4 * hidden_size),
        "b_k": (hidden_size,),          # weight_aa -- unused by forward
        "b_ih": (6 * hidden_size,),
        "b_hh": (6 * hidden_size,),
    }
    params = {}
    for name, shape in shapes.items():
        key, sub = jax.random.split(key)
        params[name] = jax.random.uniform(sub, shape, jnp.float32,
                                          minval=-stdv, maxval=stdv)
    return key, params


if __name__ == "__main__":
    INPUT_SIZE = 64
    HIDDEN_SIZE = 128
    BATCH = 8
    SEQ = 8

    key = jax.random.PRNGKey(0)
    key, params = init_params(key, INPUT_SIZE, HIDDEN_SIZE)

    key, kx, kh, kc, ke, kr = jax.random.split(key, 6)
    x_seq = jax.random.normal(kx, (SEQ, BATCH, INPUT_SIZE), jnp.float32)
    h0 = jax.random.normal(kh, (BATCH, HIDDEN_SIZE), jnp.float32)
    c0 = jax.random.normal(kc, (BATCH, HIDDEN_SIZE), jnp.float32)
    e0 = jax.random.normal(ke, (BATCH, HIDDEN_SIZE), jnp.float32)
    r0 = jax.random.normal(kr, (BATCH, HIDDEN_SIZE), jnp.float32)

    # One-time weight packing (outside the jitted step).
    packed_f32 = pack_params(params, INPUT_SIZE, HIDDEN_SIZE, jnp.float32)
    packed_bf16 = pack_params(params, INPUT_SIZE, HIDDEN_SIZE, jnp.bfloat16)

    ref_slabs = trace_lstm_seq_ref(x_seq, h0, c0, e0, r0, params)

    run_seq = jax.jit(trace_lstm_seq)

    # Exact f32 packing: tight check of the fused/sequence kernel.
    out_f32 = jax.block_until_ready(run_seq(x_seq, h0, c0, e0, r0, packed_f32))
    assert out_f32.shape == ref_slabs.shape and out_f32.dtype == ref_slabs.dtype
    assert jnp.allclose(out_f32, ref_slabs, atol=1e-4, rtol=1e-4)

    # bf16 state weights: accepted precision trade (halves the resident
    # weight footprint / DMA) -> relaxed tolerance.
    out_bf16 = jax.block_until_ready(
        run_seq(x_seq, h0, c0, e0, r0, packed_bf16))
    assert jnp.allclose(out_bf16, ref_slabs, atol=1e-1, rtol=1e-1)

    # Module-API single-step parity check.
    step = jax.jit(trace_lstm_cell)
    outs = jax.block_until_ready(step(x_seq[0], h0, c0, e0, r0, packed_f32))
    refs = trace_lstm_cell_ref(x_seq[0], h0, c0, e0, r0, params)
    for o, rref in zip(outs, refs):
        assert o.shape == rref.shape and o.dtype == rref.dtype
        assert jnp.allclose(o, rref, atol=1e-5, rtol=1e-5)

    print("KERNEL_OK")
</pallas_src>

<mosaic_0001>
module attributes {stable_mosaic.version = 11 : i64} {
  func.func @trace_lstm_seq_kernel(%arg0: i32, %arg1: memref<1x8x768xf32, #tpu.memory_space<vmem>>, %arg2: memref<8x512xf32, #tpu.memory_space<vmem>>, %arg3: memref<512x768xf32, #tpu.memory_space<vmem>>, %arg4: memref<128x128xf32, #tpu.memory_space<vmem>>, %arg5: memref<128x128xf32, #tpu.memory_space<vmem>>, %arg6: memref<1x8x512xf32, #tpu.memory_space<vmem>>, %arg7: memref<8x512xf32, #tpu.memory_space<vmem>>) attributes {dimension_semantics = [#tpu.dimension_semantics<arbitrary>], iteration_bounds = array<i64: 8>, scalar_prefetch = 0 : i64, scratch_operands = 1 : i64, tpu.core_type = #tpu.core_type<tc>, window_params = [{transform_indices = @transform_0, window_bounds = array<i64: 1, 8, 768>}, {pipeline_mode = #tpu.pipeline_mode<synchronous>, transform_indices = @transform_1, window_bounds = array<i64: 8, 512>}, {pipeline_mode = #tpu.pipeline_mode<synchronous>, transform_indices = @transform_2, window_bounds = array<i64: 512, 768>}, {pipeline_mode = #tpu.pipeline_mode<synchronous>, transform_indices = @transform_3, window_bounds = array<i64: 128, 128>}, {pipeline_mode = #tpu.pipeline_mode<synchronous>, transform_indices = @transform_4, window_bounds = array<i64: 128, 128>}, {transform_indices = @transform_5, window_bounds = array<i64: 1, 8, 512>}]} {
    %c0_i32 = arith.constant 0 : i32
    %0 = arith.cmpi eq, %arg0, %c0_i32 : i32
    %1 = arith.extui %0 : i1 to i32
    %c0_i32_0 = arith.constant 0 : i32
    %2 = arith.cmpi ne, %1, %c0_i32_0 : i32
    scf.if %2 {
      %c0_30 = arith.constant 0 : index
      %c0_31 = arith.constant 0 : index
      %65 = vector.load %arg2[%c0_30, %c0_31] : memref<8x512xf32, #tpu.memory_space<vmem>>, vector<8x512xf32>
      %c0_32 = arith.constant 0 : index
      %c0_33 = arith.constant 0 : index
      %66 = vector.load %arg7[%c0_32, %c0_33] : memref<8x512xf32, #tpu.memory_space<vmem>>, vector<8x512xf32>
      tpu.vector_store %arg7[%c0_32, %c0_33], %65 {strides = array<i32>} : memref<8x512xf32, #tpu.memory_space<vmem>>, vector<8x512xf32>,
    } else {
    }
    %c0 = arith.constant 0 : index
    %c0_1 = arith.constant 0 : index
    %3 = vector.load %arg7[%c0, %c0_1] : memref<8x512xf32, #tpu.memory_space<vmem>>, vector<8x512xf32>
    %4 = vector.extract_strided_slice %3 {offsets = [0, 128], sizes = [8, 128], strides = [1, 1]} : vector<8x512xf32> to vector<8x128xf32>
    %c0_2 = arith.constant 0 : index
    %c0_3 = arith.constant 0 : index
    %c0_4 = arith.constant 0 : index
    %5 = vector.load %arg1[%c0_2, %c0_3, %c0_4] : memref<1x8x768xf32, #tpu.memory_space<vmem>>, vector<1x8x768xf32>
    %6 = vector.shape_cast %5 : vector<1x8x768xf32> to vector<8x768xf32>
    %c0_5 = arith.constant 0 : index
    %c0_6 = arith.constant 0 : index
    %7 = vector.load %arg3[%c0_5, %c0_6] : memref<512x768xf32, #tpu.memory_space<vmem>>, vector<512x768xf32>
    %cst = arith.constant dense<0.000000e+00> : vector<8x768xf32>
    %8 = tpu.matmul %3, %7, %cst {dimension_numbers = #tpu.dot_dimension_numbers<[1], [0], [0], [1], [0, 0, 1, 1], [], []>} : vector<8x512xf32>, vector<512x768xf32>, vector<8x768xf32> -> vector<8x768xf32>
    %9 = arith.addf %6, %8 : vector<8x768xf32>
    %10 = vector.extract_strided_slice %9 {offsets = [0, 0], sizes = [8, 128], strides = [1, 1]} : vector<8x768xf32> to vector<8x128xf32>
    %11 = arith.negf %10 : vector<8x128xf32>
    %12 = math.exp %11 : vector<8x128xf32>
    %cst_7 = arith.constant 1.000000e+00 : f32
    %13 = vector.broadcast %cst_7 : f32 to vector<8x128xf32>
    %14 = arith.addf %13, %12 : vector<8x128xf32>
    %15 = arith.divf %13, %14 : vector<8x128xf32>
    %16 = vector.extract_strided_slice %9 {offsets = [0, 128], sizes = [8, 128], strides = [1, 1]} : vector<8x768xf32> to vector<8x128xf32>
    %17 = arith.negf %16 : vector<8x128xf32>
    %18 = math.exp %17 : vector<8x128xf32>
    %cst_8 = arith.constant 1.000000e+00 : f32
    %19 = vector.broadcast %cst_8 : f32 to vector<8x128xf32>
    %20 = arith.addf %19, %18 : vector<8x128xf32>
    %21 = arith.divf %19, %20 : vector<8x128xf32>
    %22 = arith.mulf %15, %4 : vector<8x128xf32>
    %23 = vector.extract_strided_slice %9 {offsets = [0, 256], sizes = [8, 128], strides = [1, 1]} : vector<8x768xf32> to vector<8x128xf32>
    %24 = math.absf %23 : vector<8x128xf32>
    %cst_9 = arith.constant 1.000000e+00 : f32
    %25 = vector.broadcast %cst_9 : f32 to vector<8x128xf32>
    %26 = arith.addf %25, %24 : vector<8x128xf32>
    %27 = arith.divf %23, %26 : vector<8x128xf32>
    %28 = arith.mulf %21, %27 : vector<8x128xf32>
    %29 = arith.addf %22, %28 : vector<8x128xf32>
    %30 = vector.extract_strided_slice %9 {offsets = [0, 384], sizes = [8, 128], strides = [1, 1]} : vector<8x768xf32> to vector<8x128xf32>
    %31 = math.absf %30 : vector<8x128xf32>
    %cst_10 = arith.constant 1.000000e+00 : f32
    %32 = vector.broadcast %cst_10 : f32 to vector<8x128xf32>
    %33 = arith.addf %32, %31 : vector<8x128xf32>
    %34 = arith.divf %30, %33 : vector<8x128xf32>
    %35 = vector.extract_strided_slice %9 {offsets = [0, 512], sizes = [8, 128], strides = [1, 1]} : vector<8x768xf32> to vector<8x128xf32>
    %36 = math.absf %35 : vector<8x128xf32>
    %cst_11 = arith.constant 1.000000e+00 : f32
    %37 = vector.broadcast %cst_11 : f32 to vector<8x128xf32>
    %38 = arith.addf %37, %36 : vector<8x128xf32>
    %39 = arith.divf %35, %38 : vector<8x128xf32>
    %40 = vector.extract_strided_slice %9 {offsets = [0, 640], sizes = [8, 128], strides = [1, 1]} : vector<8x768xf32> to vector<8x128xf32>
    %c0_12 = arith.constant 0 : index
    %c0_13 = arith.constant 0 : index
    %41 = vector.load %arg4[%c0_12, %c0_13] : memref<128x128xf32, #tpu.memory_space<vmem>>, vector<128x128xf32>
    %cst_14 = arith.constant dense<0.000000e+00> : vector<8x128xf32>
    %42 = tpu.matmul %34, %41, %cst_14 {dimension_numbers = #tpu.dot_dimension_numbers<[1], [0], [0], [1], [0, 0, 1, 1], [], []>} : vector<8x128xf32>, vector<128x128xf32>, vector<8x128xf32> -> vector<8x128xf32>
    %43 = arith.addf %40, %42 : vector<8x128xf32>
    %c0_15 = arith.constant 0 : index
    %c0_16 = arith.constant 0 : index
    %44 = vector.load %arg5[%c0_15, %c0_16] : memref<128x128xf32, #tpu.memory_space<vmem>>, vector<128x128xf32>
    %cst_17 = arith.constant dense<0.000000e+00> : vector<8x128xf32>
    %45 = tpu.matmul %39, %44, %cst_17 {dimension_numbers = #tpu.dot_dimension_numbers<[1], [0], [0], [1], [0, 0, 1, 1], [], []>} : vector<8x128xf32>, vector<128x128xf32>, vector<8x128xf32> -> vector<8x128xf32>
    %46 = arith.addf %43, %45 : vector<8x128xf32>
    %47 = arith.negf %46 : vector<8x128xf32>
    %48 = math.exp %47 : vector<8x128xf32>
    %cst_18 = arith.constant 1.000000e+00 : f32
    %49 = vector.broadcast %cst_18 : f32 to vector<8x128xf32>
    %50 = arith.addf %49, %48 : vector<8x128xf32>
    %51 = arith.divf %49, %50 : vector<8x128xf32>
    %52 = math.absf %29 : vector<8x128xf32>
    %cst_19 = arith.constant 1.000000e+00 : f32
    %53 = vector.broadcast %cst_19 : f32 to vector<8x128xf32>
    %54 = arith.addf %53, %52 : vector<8x128xf32>
    %55 = arith.divf %29, %54 : vector<8x128xf32>
    %56 = arith.mulf %51, %55 : vector<8x128xf32>
    %c0_20 = arith.constant 0 : index
    %c0_21 = arith.constant 0 : index
    %57 = vector.load %arg7[%c0_20, %c0_21] : memref<8x512xf32, #tpu.memory_space<vmem>>, vector<8x128xf32>
    tpu.vector_store %arg7[%c0_20, %c0_21], %56 {strides = array<i32>} : memref<8x512xf32, #tpu.memory_space<vmem>>, vector<8x128xf32>,
    %c0_22 = arith.constant 0 : index
    %c128 = arith.constant 128 : index
    %58 = vector.load %arg7[%c0_22, %c128] : memref<8x512xf32, #tpu.memory_space<vmem>>, vector<8x128xf32>
    tpu.vector_store %arg7[%c0_22, %c128], %29 {strides = array<i32>} : memref<8x512xf32, #tpu.memory_space<vmem>>, vector<8x128xf32>,
    %c0_23 = arith.constant 0 : index
    %c256 = arith.constant 256 : index
    %59 = vector.load %arg7[%c0_23, %c256] : memref<8x512xf32, #tpu.memory_space<vmem>>, vector<8x128xf32>
    tpu.vector_store %arg7[%c0_23, %c256], %34 {strides = array<i32>} : memref<8x512xf32, #tpu.memory_space<vmem>>, vector<8x128xf32>,
    %c0_24 = arith.constant 0 : index
    %c384 = arith.constant 384 : index
    %60 = vector.load %arg7[%c0_24, %c384] : memref<8x512xf32, #tpu.memory_space<vmem>>, vector<8x128xf32>
    tpu.vector_store %arg7[%c0_24, %c384], %39 {strides = array<i32>} : memref<8x512xf32, #tpu.memory_space<vmem>>, vector<8x128xf32>,
    %c0_25 = arith.constant 0 : index
    %c0_26 = arith.constant 0 : index
    %61 = vector.load %arg7[%c0_25, %c0_26] : memref<8x512xf32, #tpu.memory_space<vmem>>, vector<8x512xf32>
    %c0_27 = arith.constant 0 : index
    %c0_28 = arith.constant 0 : index
    %c0_29 = arith.constant 0 : index
    %62 = vector.load %arg6[%c0_27, %c0_28, %c0_29] : memref<1x8x512xf32, #tpu.memory_space<vmem>>, vector<1x8x512xf32>
    %63 = vector.shape_cast %62 : vector<1x8x512xf32> to vector<8x512xf32>
    %64 = vector.shape_cast %61 : vector<8x512xf32> to vector<1x8x512xf32>
    tpu.vector_store %arg6[%c0_27, %c0_28, %c0_29], %64 {strides = array<i32>} : memref<1x8x512xf32, #tpu.memory_space<vmem>>, vector<1x8x512xf32>,
    return
  }
  func.func @transform_0(%arg0: i32) -> (i32, i32, i32) {
    %c0_i32 = arith.constant 0 : i32
    %c0_i32_0 = arith.constant 0 : i32
    %c0_i32_1 = arith.constant 0 : i32
    return %arg0, %c0_i32, %c0_i32_0 : i32, i32, i32
  }
  func.func @transform_1(%arg0: i32) -> (i32, i32) {
    %c0_i32 = arith.constant 0 : i32
    %c0_i32_0 = arith.constant 0 : i32
    %c0_i32_1 = arith.constant 0 : i32
    return %c0_i32, %c0_i32_0 : i32, i32
  }
  func.func @transform_2(%arg0: i32) -> (i32, i32) {
    %c0_i32 = arith.constant 0 : i32
    %c0_i32_0 = arith.constant 0 : i32
    %c0_i32_1 = arith.constant 0 : i32
    return %c0_i32, %c0_i32_0 : i32, i32
  }
  func.func @transform_3(%arg0: i32) -> (i32, i32) {
    %c0_i32 = arith.constant 0 : i32
    %c0_i32_0 = arith.constant 0 : i32
    %c0_i32_1 = arith.constant 0 : i32
    return %c0_i32, %c0_i32_0 : i32, i32
  }
  func.func @transform_4(%arg0: i32) -> (i32, i32) {
    %c0_i32 = arith.constant 0 : i32
    %c0_i32_0 = arith.constant 0 : i32
    %c0_i32_1 = arith.constant 0 : i32
    return %c0_i32, %c0_i32_0 : i32, i32
  }
  func.func @transform_5(%arg0: i32) -> (i32, i32, i32) {
    %c0_i32 = arith.constant 0 : i32
    %c0_i32_0 = arith.constant 0 : i32
    %c0_i32_1 = arith.constant 0 : i32
    return %arg0, %c0_i32, %c0_i32_0 : i32, i32, i32
  }
}

</mosaic_0001>

<llo_original>
// kernel: trace_lstm_seq.1
$region0: #{trace_lstm_seq.1}
  #allocation0 [shape = 'u32[]', space=smem, size = 0x4, offset = 0x4, fixed_abs, tag = 'smem constant byte address 0x4 - core index']
  #allocation1 [shape = 'u32[144,128]{1,0:T(1,128)}', space=vmem, size = 0x12000, scoped, tag = 'internal scratch']
  #allocation2 [shape = 'f32[8,512]{1,0:T(8,128)}', space=vmem, size = 0x4000, scoped, tag = 'scratch operand']
  %s0 = inlined_call_operand.vmem [shape: f32[8,8,768], index: 0, kind: input, shape index: {}]
  %s1 = inlined_call_operand.vmem [shape: f32[8,512], index: 1, kind: input, shape index: {}]
  %s2 = inlined_call_operand.hbm [shape: f32[512,768], index: 2, kind: input, shape index: {}]
  %s3 = inlined_call_operand.hbm [shape: f32[128,128], index: 3, kind: input, shape index: {}]
  %s4 = inlined_call_operand.hbm [shape: f32[128,128], index: 4, kind: input, shape index: {}]
  %s5 = inlined_call_operand.hbm [shape: f32[8,8,512], index: 5, kind: output, shape index: {}]
  %s6 = sld [smem:[#allocation0]]
  $region69: #{trace_lstm_seq.1} parent=0
    _
  %s8 = ssub.s32 1, %s6
  %s9 = scalar_select 0, %s8, %s6
  $region1: #{trace_lstm_seq.1} parent=0
    #allocation3 [shape = 'u8[1572864]{0}', space=vmem, size = 0x180000, scoped, tag = 'input window, operand 2, single buffered']
    #allocation4 [shape = 's32[2]{0}', space=sflag, size = 0x8, scoped, tag = 'scoped memory for trace_lstm_seq.1']
    #allocation5 [shape = 's32[2]{0}', space=sflag, size = 0x8, scoped, tag = 'scoped memory for trace_lstm_seq.1']
    #allocation6 [shape = 'u8[65536]{0}', space=vmem, size = 0x10000, scoped, tag = 'input window, operand 3, single buffered']
    #allocation7 [shape = 's32[1]{0}', space=sflag, size = 0x4, scoped, tag = 'scoped memory for trace_lstm_seq.1']
    #allocation8 [shape = 'u8[65536]{0}', space=vmem, size = 0x10000, scoped, tag = 'input window, operand 4, single buffered']
    #allocation9 [shape = 'u8[32768]{0}', space=vmem, size = 0x8000, scoped, tag = 'output window, operand 0']
    %10 = vsyncpa [#allocation4], 0
    %11 = vsyncpa [#allocation7], 0
    %12 = vsyncpa [#allocation5], 0
    %s13 = scalar_lea.sflag [#allocation5], 1
    %14 = vsyncpa %s13, 0
    loop: start=0, step=1, limit=10
    $region2: #{trace_lstm_seq.1} parent=1 // loop_pre_header
      _
    $region3: #{trace_lstm_seq.1} parent=1 // loop_header
      %s16 = sphi 0, %s20
      %p17 = scmp.ge.s32.totalorder %s16, 10
      %s26 = sphi 0, %s28
      %s29 = sphi 0, %s26
      %s30 = sphi 0, %s29
      %s46 = sphi 0, %s30
      %s50 = sphi 0, %s50
      %s52 = sphi 0, %s50
      %s53 = sphi 0, %s52
      %s67 = sphi 0, %s53
      %s71 = sphi 0, %s71
      %s73 = sphi 0, %s71
      %s74 = sphi 0, %s73
      %s88 = sphi 0, %s74
      %s92 = sphi 0, %s92
      %s94 = sphi 0, %s92
      %s95 = sphi 0, %s94
      %s109 = sphi 0, %s95
      %s113 = sphi 0, %s113
      %s115 = sphi 0, %s113
      %s116 = sphi 0, %s115
      %s130 = sphi 0, %s116
      %s136 = sphi 0, %s138
      %s139 = sphi 0, %s136
      %s140 = sphi 0, %s139
      %s156 = sphi 0, %s140
    $region4: #{trace_lstm_seq.1} parent=1 // loop_header_branch
      %19 = sbr.rel (%p17) target = $region8
    $region5: #{trace_lstm_seq.1} parent=1 // loop_body
      %s21 = ssub.s32 %s16, 1
      %s22 = ssub.s32 %s16, 2
      %s23 = sadd.s32 %s16, 1
      %s24 = ssub.s32 %s16, %s23
      %p25 = scmp.eq.s32.totalorder %s24, 0
      %s27 = sadd.s32 %s26, 1
      %s28 = scalar_select %p25, %s26, %s27
      %p31 = pneg %p25
      %p32 = scmp.eq.s32.totalorder %s16, 7
      %p33 = por %p31, %p32
      %p34 = scmp.ne.s32.totalorder %s26, %s29
      %p35 = scmp.eq.s32.totalorder %s16, 0
      %p36 = por %p34, %p35
      %p37 = scmp.ne.s32.totalorder %s26, %s29
      %p38 = scmp.eq.s32.totalorder %s21, 7
      %p39 = por %p37, %p38
      %p40 = scmp.ne.s32.totalorder %s29, %s30
      %p41 = scmp.eq.s32.totalorder %s21, 0
      %p42 = por %p40, %p41
      %p43 = scmp.ne.s32.totalorder %s29, %s30
      %p44 = scmp.eq.s32.totalorder %s22, 7
      %p45 = por %p43, %p44
      %p47 = scmp.ne.s32.totalorder %s30, %s46
      %p48 = scmp.eq.s32.totalorder %s22, 0
      %p49 = por %p47, %p48
      %s51 = sadd.s32 %s50, 1
      %p54 = scmp.eq.s32.totalorder %s16, 7
      %p55 = scmp.ne.s32.totalorder %s50, %s52
      %p56 = scmp.eq.s32.totalorder %s16, 0
      %p57 = por %p55, %p56
      %p58 = scmp.ne.s32.totalorder %s50, %s52
      %p59 = scmp.eq.s32.totalorder %s21, 7
      %p60 = por %p58, %p59
      %p61 = scmp.ne.s32.totalorder %s52, %s53
      %p62 = scmp.eq.s32.totalorder %s21, 0
      %p63 = por %p61, %p62
      %p64 = scmp.ne.s32.totalorder %s52, %s53
      %p65 = scmp.eq.s32.totalorder %s22, 7
      %p66 = por %p64, %p65
      %p68 = scmp.ne.s32.totalorder %s53, %s67
      %p69 = scmp.eq.s32.totalorder %s22, 0
      %p70 = por %p68, %p69
      %s72 = sadd.s32 %s71, 1
      %p75 = scmp.eq.s32.totalorder %s16, 7
      %p76 = scmp.ne.s32.totalorder %s71, %s73
      %p77 = scmp.eq.s32.totalorder %s16, 0
      %p78 = por %p76, %p77
      %p79 = scmp.ne.s32.totalorder %s71, %s73
      %p80 = scmp.eq.s32.totalorder %s21, 7
      %p81 = por %p79, %p80
      %p82 = scmp.ne.s32.totalorder %s73, %s74
      %p83 = scmp.eq.s32.totalorder %s21, 0
      %p84 = por %p82, %p83
      %p85 = scmp.ne.s32.totalorder %s73, %s74
      %p86 = scmp.eq.s32.totalorder %s22, 7
      %p87 = por %p85, %p86
      %p89 = scmp.ne.s32.totalorder %s74, %s88
      %p90 = scmp.eq.s32.totalorder %s22, 0
      %p91 = por %p89, %p90
      %s93 = sadd.s32 %s92, 1
      %p96 = scmp.eq.s32.totalorder %s16, 7
      %p97 = scmp.ne.s32.totalorder %s92, %s94
      %p98 = scmp.eq.s32.totalorder %s16, 0
      %p99 = por %p97, %p98
      %p100 = scmp.ne.s32.totalorder %s92, %s94
      %p101 = scmp.eq.s32.totalorder %s21, 7
      %p102 = por %p100, %p101
      %p103 = scmp.ne.s32.totalorder %s94, %s95
      %p104 = scmp.eq.s32.totalorder %s21, 0
      %p105 = por %p103, %p104
      %p106 = scmp.ne.s32.totalorder %s94, %s95
      %p107 = scmp.eq.s32.totalorder %s22, 7
      %p108 = por %p106, %p107
      %p110 = scmp.ne.s32.totalorder %s95, %s109
      %p111 = scmp.eq.s32.totalorder %s22, 0
      %p112 = por %p110, %p111
      %s114 = sadd.s32 %s113, 1
      %p117 = scmp.eq.s32.totalorder %s16, 7
      %p118 = scmp.ne.s32.totalorder %s113, %s115
      %p119 = scmp.eq.s32.totalorder %s16, 0
      %p120 = por %p118, %p119
      %p121 = scmp.ne.s32.totalorder %s113, %s115
      %p122 = scmp.eq.s32.totalorder %s21, 7
      %p123 = por %p121, %p122
      %p124 = scmp.ne.s32.totalorder %s115, %s116
      %p125 = scmp.eq.s32.totalorder %s21, 0
      %p126 = por %p124, %p125
      %p127 = scmp.ne.s32.totalorder %s115, %s116
      %p128 = scmp.eq.s32.totalorder %s22, 7
      %p129 = por %p127, %p128
      %p131 = scmp.ne.s32.totalorder %s116, %s130
      %p132 = scmp.eq.s32.totalorder %s22, 0
      %p133 = por %p131, %p132
      %s134 = ssub.s32 %s16, %s23
      %p135 = scmp.eq.s32.totalorder %s134, 0
      %s137 = sadd.s32 %s136, 1
      %s138 = scalar_select %p135, %s136, %s137
      %p141 = pneg %p135
      %p142 = scmp.eq.s32.totalorder %s16, 7
      %p143 = por %p141, %p142
      %p144 = scmp.ne.s32.totalorder %s136, %s139
      %p145 = scmp.eq.s32.totalorder %s16, 0
      %p146 = por %p144, %p145
      %p147 = scmp.ne.s32.totalorder %s136, %s139
      %p148 = scmp.eq.s32.totalorder %s21, 7
      %p149 = por %p147, %p148
      %p150 = scmp.ne.s32.totalorder %s139, %s140
      %p151 = scmp.eq.s32.totalorder %s21, 0
      %p152 = por %p150, %p151
      %p153 = scmp.ne.s32.totalorder %s139, %s140
      %p154 = scmp.eq.s32.totalorder %s22, 7
      %p155 = por %p153, %p154
      %p157 = scmp.ne.s32.totalorder %s140, %s156
      %p158 = scmp.eq.s32.totalorder %s22, 0
      %p159 = por %p157, %p158
      %p160 = scmp.le.s32.totalorder 1, %s16
      %p161 = scmp.lt.s32.totalorder %s16, 9
      %p162 = pnand %p160, %p161
      %p163 = pneg %p162
      // Predicated region
      $region9: #{trace_lstm_seq.1} parent=5 // pred_check
        _
      $region10: #{trace_lstm_seq.1} parent=5 // pred_check_branch
        %165 = sbr.rel (%p162) target = $region12
      $region11: #{trace_lstm_seq.1} parent=5 // pred_region
        %s166 = ssub.s32 %s16, 1
        // Predicated region
        $region13: #{trace_lstm_seq.1} parent=11 // pred_check
          %p167 = pneg %p63
        $region14: #{trace_lstm_seq.1} parent=11 // pred_check_branch
          %169 = sbr.rel (%p167) target = $region16
        $region15: #{trace_lstm_seq.1} parent=11 // pred_region
          _
        $region16: #{trace_lstm_seq.1} parent=11 // pred_fallthru
          _
        // Predicated region
        $region17: #{trace_lstm_seq.1} parent=11 // pred_check
          %p170 = pneg %p84
        $region18: #{trace_lstm_seq.1} parent=11 // pred_check_branch
          %172 = sbr.rel (%p170) target = $region20
        $region19: #{trace_lstm_seq.1} parent=11 // pred_region
          %s174 = ssub.s32 49152, 49152
          %175 = vsyncadd [#allocation4], %s174
          %s176 = sshll.u32 [#allocation3], 4
          %s177 = int_to_ptr.vmem [resolvable:$true] %s176
          %182 = dma.hbm_to_vmem [thread:$0]  %s2, 49152, %s177, [#allocation4], 768, 768, 48
        $region20: #{trace_lstm_seq.1} parent=11 // pred_fallthru
          _
        // Predicated region
        $region21: #{trace_lstm_seq.1} parent=11 // pred_check
          %p183 = pneg %p105
        $region22: #{trace_lstm_seq.1} parent=11 // pred_check_branch
          %185 = sbr.rel (%p183) target = $region24
        $region23: #{trace_lstm_seq.1} parent=11 // pred_region
          %s187 = ssub.s32 2048, 2048
          %188 = vsyncadd [#allocation7], %s187
          %s189 = sshll.u32 [#allocation6], 4
          %s190 = int_to_ptr.vmem [resolvable:$true] %s189
          %195 = dma.hbm_to_vmem [thread:$0]  %s3, 2048, %s190, [#allocation7], 128, 128, 8
        $region24: #{trace_lstm_seq.1} parent=11 // pred_fallthru
          _
        // Predicated region
        $region25: #{trace_lstm_seq.1} parent=11 // pred_check
          %p196 = pneg %p126
        $region26: #{trace_lstm_seq.1} parent=11 // pred_check_branch
          %198 = sbr.rel (%p196) target = $region28
        $region27: #{trace_lstm_seq.1} parent=11 // pred_region
          %s200 = ssub.s32 2048, 2048
          %201 = vsyncadd [#allocation7], %s200
          %s202 = sshll.u32 [#allocation8], 4
          %s203 = int_to_ptr.vmem [resolvable:$true] %s202
          %208 = dma.hbm_to_vmem [thread:$0]  %s4, 2048, %s203, [#allocation7], 128, 128, 8
        $region28: #{trace_lstm_seq.1} parent=11 // pred_fallthru
          _
      $region12: #{trace_lstm_seq.1} parent=5 // pred_fallthru
        _
      %p209 = scmp.lt.s32.totalorder %s16, 8
      // Predicated region
      $region29: #{trace_lstm_seq.1} parent=5 // pred_check
        %p210 = pneg %p209
      $region30: #{trace_lstm_seq.1} parent=5 // pred_check_branch
        %212 = sbr.rel (%p210) target = $region32
      $region31: #{trace_lstm_seq.1} parent=5 // pred_region
        // Predicated region
        $region33: #{trace_lstm_seq.1} parent=31 // pred_check
          %p213 = pneg %p36
        $region34: #{trace_lstm_seq.1} parent=31 // pred_check_branch
          %215 = sbr.rel (%p213) target = $region36
        $region35: #{trace_lstm_seq.1} parent=31 // pred_region
          %p216 = scmp.lt.s32.totalorder %s16, 7
          %s217 = scalar_select %p216, %s16, 7
          %s218 = smul.addr %s217, 6
          %s219 = smul.addr %s218, 8
          %s220 = scalar_lea.vmem %s0, %s219
        $region36: #{trace_lstm_seq.1} parent=31 // pred_fallthru
          _
      $region32: #{trace_lstm_seq.1} parent=5 // pred_fallthru
        _
      %p221 = scmp.le.s32.totalorder 1, %s16
      %p222 = scmp.lt.s32.totalorder %s16, 9
      %p223 = pnand %p221, %p222
      %p224 = pneg %p223
      // Predicated region
      $region37: #{trace_lstm_seq.1} parent=5 // pred_check
        _
      $region38: #{trace_lstm_seq.1} parent=5 // pred_check_branch
        %226 = sbr.rel (%p223) target = $region40
      $region39: #{trace_lstm_seq.1} parent=5 // pred_region
        %s227 = ssub.s32 %s16, 1
        // Predicated region
        $region41: #{trace_lstm_seq.1} parent=39 // pred_check
          %p228 = pneg %p84
        $region42: #{trace_lstm_seq.1} parent=39 // pred_check_branch
          %230 = sbr.rel (%p228) target = $region44
        $region43: #{trace_lstm_seq.1} parent=39 // pred_region
          %231 = dma.done [#allocation4], 49152
        $region44: #{trace_lstm_seq.1} parent=39 // pred_fallthru
          _
        // Predicated region
        $region45: #{trace_lstm_seq.1} parent=39 // pred_check
          %p232 = pneg %p105
        $region46: #{trace_lstm_seq.1} parent=39 // pred_check_branch
          %234 = sbr.rel (%p232) target = $region48
        $region47: #{trace_lstm_seq.1} parent=39 // pred_region
          %235 = dma.done [#allocation7], 2048
        $region48: #{trace_lstm_seq.1} parent=39 // pred_fallthru
          _
        // Predicated region
        $region49: #{trace_lstm_seq.1} parent=39 // pred_check
          %p236 = pneg %p126
        $region50: #{trace_lstm_seq.1} parent=39 // pred_check_branch
          %238 = sbr.rel (%p236) target = $region52
        $region51: #{trace_lstm_seq.1} parent=39 // pred_region
          %239 = dma.done [#allocation7], 2048
        $region52: #{trace_lstm_seq.1} parent=39 // pred_fallthru
          _
        %p240 = scmp.lt.s32.totalorder %s21, 7
        %s241 = scalar_select %p240, %s21, 7
        %s242 = smul.addr %s241, 6
        %s243 = smul.addr %s242, 8
        %s244 = scalar_lea.vmem %s0, %s243
        %p245 = pneg %p42
        %p246 = pneg %p39
        %p247 = pneg %p63
        %p248 = pneg %p60
        %p249 = pneg %p84
        %p250 = pneg %p81
        %p251 = pneg %p105
        %p252 = pneg %p102
        %p253 = pneg %p126
        %p254 = pneg %p123
        %p255 = pneg %p152
        %p256 = pneg %p149
        %s257 = sand.u32 %s139, 1
        %s258 = scalar_lea.sflag [#allocation5], %s257
        %s259 = sand.u32 %s139, 1
        %s260 = smul.addr %s259, 32
        %s261 = scalar_lea.vmem [#allocation9], %s260
        %p262 = scmp.lt.s32.totalorder %s21, 7
        %s263 = scalar_select %p262, %s21, 7
        %s264 = smul.addr %s263, 6
        %s265 = smul.addr %s264, 8
        %s266 = scalar_lea.vmem %s0, %s265
        %p267 = scmp.eq.s32.totalorder %s21, 0
        // Predicated region
        $region53: #{trace_lstm_seq.1} parent=39 // pred_check
          %p268 = pneg %p267
        $region54: #{trace_lstm_seq.1} parent=39 // pred_check_branch
          %270 = sbr.rel (%p268) target = $region56
        $region55: #{trace_lstm_seq.1} parent=39 // pred_region
          %v271 = vld [vmem:[%s1] sm:$0xff]
          %v272 = vld [vmem:[%s1 + $0x8] sm:$0xff]
          %v273 = vld [vmem:[%s1 + $0x10] sm:$0xff]
          %v274 = vld [vmem:[%s1 + $0x18] sm:$0xff]
          %275 = vst [vmem:[#allocation2] sm:$0xff] %v271
          %276 = vst [vmem:[#allocation2 + $0x8] sm:$0xff] %v272
          %277 = vst [vmem:[#allocation2 + $0x10] sm:$0xff] %v273
          %278 = vst [vmem:[#allocation2 + $0x18] sm:$0xff] %v274
        $region56: #{trace_lstm_seq.1} parent=39 // pred_fallthru
          _
        %v279 = vld [vmem:[#allocation2] sm:$0xff]
        %v280 = vld [vmem:[#allocation2 + $0x8] sm:$0xff]
        %v281 = vld [vmem:[#allocation2 + $0x10] sm:$0xff]
        %v282 = vld [vmem:[#allocation2 + $0x18] sm:$0xff]
        %v283 = vld [vmem:[%s266] sm:$0xff]
        %v284 = vld [vmem:[%s266 + $0x8] sm:$0xff]
        %v285 = vld [vmem:[%s266 + $0x10] sm:$0xff]
        %v286 = vld [vmem:[%s266 + $0x18] sm:$0xff]
        %v287 = vld [vmem:[%s266 + $0x20] sm:$0xff]
        %v288 = vld [vmem:[%s266 + $0x28] sm:$0xff]
        %v289 = vld [vmem:[#allocation3] sm:$0xff]
        %v290 = vld [vmem:[#allocation3 + $0x8] sm:$0xff]
        %v291 = vld [vmem:[#allocation3 + $0x10] sm:$0xff]
        %v292 = vld [vmem:[#allocation3 + $0x18] sm:$0xff]
        %v293 = vld [vmem:[#allocation3 + $0x20] sm:$0xff]
        %v294 = vld [vmem:[#allocation3 + $0x28] sm:$0xff]
        %v295 = vld [vmem:[#allocation3 + $0x30] sm:$0xff]
        %v296 = vld [vmem:[#allocation3 + $0x38] sm:$0xff]
        %v297 = vld [vmem:[#allocation3 + $0x40] sm:$0xff]
        %v298 = vld [vmem:[#allocation3 + $0x48] sm:$0xff]
        %v299 = vld [vmem:[#allocation3 + $0x50] sm:$0xff]
        %v300 = vld [vmem:[#allocation3 + $0x58] sm:$0xff]
        %v301 = vld [vmem:[#allocation3 + $0x60] sm:$0xff]
        %v302 = vld [vmem:[#allocation3 + $0x68] sm:$0xff]
        %v303 = vld [vmem:[#allocation3 + $0x70] sm:$0xff]
        %v304 = vld [vmem:[#allocation3 + $0x78] sm:$0xff]
        %v305 = vld [vmem:[#allocation3 + $0x80] sm:$0xff]
        %v306 = vld [vmem:[#allocation3 + $0x88] sm:$0xff]
        %v307 = vld [vmem:[#allocation3 + $0x90] sm:$0xff]
        %v308 = vld [vmem:[#allocation3 + $0x98] sm:$0xff]
        %v309 = vld [vmem:[#allocation3 + $0xa0] sm:$0xff]
        %v310 = vld [vmem:[#allocation3 + $0xa8] sm:$0xff]
        %v311 = vld [vmem:[#allocation3 + $0xb0] sm:$0xff]
        %v312 = vld [vmem:[#allocation3 + $0xb8] sm:$0xff]
        %v313 = vld [vmem:[#allocation3 + $0xc0] sm:$0xff]
        %v314 = vld [vmem:[#allocation3 + $0xc8] sm:$0xff]
        %v315 = vld [vmem:[#allocation3 + $0xd0] sm:$0xff]
        %v316 = vld [vmem:[#allocation3 + $0xd8] sm:$0xff]
        %v317 = vld [vmem:[#allocation3 + $0xe0] sm:$0xff]
        %v318 = vld [vmem:[#allocation3 + $0xe8] sm:$0xff]
        %v319 = vld [vmem:[#allocation3 + $0xf0] sm:$0xff]
        %v320 = vld [vmem:[#allocation3 + $0xf8] sm:$0xff]
        %v321 = vld [vmem:[#allocation3 + $0x100] sm:$0xff]
        %v322 = vld [vmem:[#allocation3 + $0x108] sm:$0xff]
        %v323 = vld [vmem:[#allocation3 + $0x110] sm:$0xff]
        %v324 = vld [vmem:[#allocation3 + $0x118] sm:$0xff]
        %v325 = vld [vmem:[#allocation3 + $0x120] sm:$0xff]
        %v326 = vld [vmem:[#allocation3 + $0x128] sm:$0xff]
        %v327 = vld [vmem:[#allocation3 + $0x130] sm:$0xff]
        %v328 = vld [vmem:[#allocation3 + $0x138] sm:$0xff]
        %v329 = vld [vmem:[#allocation3 + $0x140] sm:$0xff]
        %v330 = vld [vmem:[#allocation3 + $0x148] sm:$0xff]
        %v331 = vld [vmem:[#allocation3 + $0x150] sm:$0xff]
        %v332 = vld [vmem:[#allocation3 + $0x158] sm:$0xff]
        %v333 = vld [vmem:[#allocation3 + $0x160] sm:$0xff]
        %v334 = vld [vmem:[#allocation3 + $0x168] sm:$0xff]
        %v335 = vld [vmem:[#allocation3 + $0x170] sm:$0xff]
        %v336 = vld [vmem:[#allocation3 + $0x178] sm:$0xff]
        %v337 = vld [vmem:[#allocation3 + $0x180] sm:$0xff]
        %v338 = vld [vmem:[#allocation3 + $0x188] sm:$0xff]
        %v339 = vld [vmem:[#allocation3 + $0x190] sm:$0xff]
        %v340 = vld [vmem:[#allocation3 + $0x198] sm:$0xff]
        %v341 = vld [vmem:[#allocation3 + $0x1a0] sm:$0xff]
        %v342 = vld [vmem:[#allocation3 + $0x1a8] sm:$0xff]
        %v343 = vld [vmem:[#allocation3 + $0x1b0] sm:$0xff]
        %v344 = vld [vmem:[#allocation3 + $0x1b8] sm:$0xff]
        %v345 = vld [vmem:[#allocation3 + $0x1c0] sm:$0xff]
        %v346 = vld [vmem:[#allocation3 + $0x1c8] sm:$0xff]
        %v347 = vld [vmem:[#allocation3 + $0x1d0] sm:$0xff]
        %v348 = vld [vmem:[#allocation3 + $0x1d8] sm:$0xff]
        %v349 = vld [vmem:[#allocation3 + $0x1e0] sm:$0xff]
        %v350 = vld [vmem:[#allocation3 + $0x1e8] sm:$0xff]
        %v351 = vld [vmem:[#allocation3 + $0x1f0] sm:$0xff]
        %v352 = vld [vmem:[#allocation3 + $0x1f8] sm:$0xff]
        %v353 = vld [vmem:[#allocation3 + $0x200] sm:$0xff]
        %v354 = vld [vmem:[#allocation3 + $0x208] sm:$0xff]
        %v355 = vld [vmem:[#allocation3 + $0x210] sm:$0xff]
        %v356 = vld [vmem:[#allocation3 + $0x218] sm:$0xff]
        %v357 = vld [vmem:[#allocation3 + $0x220] sm:$0xff]
        %v358 = vld [vmem:[#allocation3 + $0x228] sm:$0xff]
        %v359 = vld [vmem:[#allocation3 + $0x230] sm:$0xff]
        %v360 = vld [vmem:[#allocation3 + $0x238] sm:$0xff]
        %v361 = vld [vmem:[#allocation3 + $0x240] sm:$0xff]
        %v362 = vld [vmem:[#allocation3 + $0x248] sm:$0xff]
        %v363 = vld [vmem:[#allocation3 + $0x250] sm:$0xff]
        %v364 = vld [vmem:[#allocation3 + $0x258] sm:$0xff]
        %v365 = vld [vmem:[#allocation3 + $0x260] sm:$0xff]
        %v366 = vld [vmem:[#allocation3 + $0x268] sm:$0xff]
        %v367 = vld [vmem:[#allocation3 + $0x270] sm:$0xff]
        %v368 = vld [vmem:[#allocation3 + $0x278] sm:$0xff]
        %v369 = vld [vmem:[#allocation3 + $0x280] sm:$0xff]
        %v370 = vld [vmem:[#allocation3 + $0x288] sm:$0xff]
        %v371 = vld [vmem:[#allocation3 + $0x290] sm:$0xff]
        %v372 = vld [vmem:[#allocation3 + $0x298] sm:$0xff]
        %v373 = vld [vmem:[#allocation3 + $0x2a0] sm:$0xff]
        %v374 = vld [vmem:[#allocation3 + $0x2a8] sm:$0xff]
        %v375 = vld [vmem:[#allocation3 + $0x2b0] sm:$0xff]
        %v376 = vld [vmem:[#allocation3 + $0x2b8] sm:$0xff]
        %v377 = vld [vmem:[#allocation3 + $0x2c0] sm:$0xff]
        %v378 = vld [vmem:[#allocation3 + $0x2c8] sm:$0xff]
        %v379 = vld [vmem:[#allocation3 + $0x2d0] sm:$0xff]
        %v380 = vld [vmem:[#allocation3 + $0x2d8] sm:$0xff]
        %v381 = vld [vmem:[#allocation3 + $0x2e0] sm:$0xff]
        %v382 = vld [vmem:[#allocation3 + $0x2e8] sm:$0xff]
        %v383 = vld [vmem:[#allocation3 + $0x2f0] sm:$0xff]
        %v384 = vld [vmem:[#allocation3 + $0x2f8] sm:$0xff]
        %v385 = vld [vmem:[#allocation3 + $0x300] sm:$0xff]
        %v386 = vld [vmem:[#allocation3 + $0x308] sm:$0xff]
        %v387 = vld [vmem:[#allocation3 + $0x310] sm:$0xff]
        %v388 = vld [vmem:[#allocation3 + $0x318] sm:$0xff]
        %v389 = vld [vmem:[#allocation3 + $0x320] sm:$0xff]
        %v390 = vld [vmem:[#allocation3 + $0x328] sm:$0xff]
        %v391 = vld [vmem:[#allocation3 + $0x330] sm:$0xff]
        %v392 = vld [vmem:[#allocation3 + $0x338] sm:$0xff]
        %v393 = vld [vmem:[#allocation3 + $0x340] sm:$0xff]
        %v394 = vld [vmem:[#allocation3 + $0x348] sm:$0xff]
        %v395 = vld [vmem:[#allocation3 + $0x350] sm:$0xff]
        %v396 = vld [vmem:[#allocation3 + $0x358] sm:$0xff]
        %v397 = vld [vmem:[#allocation3 + $0x360] sm:$0xff]
        %v398 = vld [vmem:[#allocation3 + $0x368] sm:$0xff]
        %v399 = vld [vmem:[#allocation3 + $0x370] sm:$0xff]
        %v400 = vld [vmem:[#allocation3 + $0x378] sm:$0xff]
        %v401 = vld [vmem:[#allocation3 + $0x380] sm:$0xff]
        %v402 = vld [vmem:[#allocation3 + $0x388] sm:$0xff]
        %v403 = vld [vmem:[#allocation3 + $0x390] sm:$0xff]
        %v404 = vld [vmem:[#allocation3 + $0x398] sm:$0xff]
        %v405 = vld [vmem:[#allocation3 + $0x3a0] sm:$0xff]
        %v406 = vld [vmem:[#allocation3 + $0x3a8] sm:$0xff]
        %v407 = vld [vmem:[#allocation3 + $0x3b0] sm:$0xff]
        %v408 = vld [vmem:[#allocation3 + $0x3b8] sm:$0xff]
        %v409 = vld [vmem:[#allocation3 + $0x3c0] sm:$0xff]
        %v410 = vld [vmem:[#allocation3 + $0x3c8] sm:$0xff]
        %v411 = vld [vmem:[#allocation3 + $0x3d0] sm:$0xff]
        %v412 = vld [vmem:[#allocation3 + $0x3d8] sm:$0xff]
        %v413 = vld [vmem:[#allocation3 + $0x3e0] sm:$0xff]
        %v414 = vld [vmem:[#allocation3 + $0x3e8] sm:$0xff]
        %v415 = vld [vmem:[#allocation3 + $0x3f0] sm:$0xff]
        %v416 = vld [vmem:[#allocation3 + $0x3f8] sm:$0xff]
        %v417 = vld [vmem:[#allocation3 + $0x400] sm:$0xff]
        %v418 = vld [vmem:[#allocation3 + $0x408] sm:$0xff]
        %v419 = vld [vmem:[#allocation3 + $0x410] sm:$0xff]
        %v420 = vld [vmem:[#allocation3 + $0x418] sm:$0xff]
        %v421 = vld [vmem:[#allocation3 + $0x420] sm:$0xff]
        %v422 = vld [vmem:[#allocation3 + $0x428] sm:$0xff]
        %v423 = vld [vmem:[#allocation3 + $0x430] sm:$0xff]
        %v424 = vld [vmem:[#allocation3 + $0x438] sm:$0xff]
        %v425 = vld [vmem:[#allocation3 + $0x440] sm:$0xff]
        %v426 = vld [vmem:[#allocation3 + $0x448] sm:$0xff]
        %v427 = vld [vmem:[#allocation3 + $0x450] sm:$0xff]
        %v428 = vld [vmem:[#allocation3 + $0x458] sm:$0xff]
        %v429 = vld [vmem:[#allocation3 + $0x460] sm:$0xff]
        %v430 = vld [vmem:[#allocation3 + $0x468] sm:$0xff]
        %v431 = vld [vmem:[#allocation3 + $0x470] sm:$0xff]
        %v432 = vld [vmem:[#allocation3 + $0x478] sm:$0xff]
        %v433 = vld [vmem:[#allocation3 + $0x480] sm:$0xff]
        %v434 = vld [vmem:[#allocation3 + $0x488] sm:$0xff]
        %v435 = vld [vmem:[#allocation3 + $0x490] sm:$0xff]
        %v436 = vld [vmem:[#allocation3 + $0x498] sm:$0xff]
        %v437 = vld [vmem:[#allocation3 + $0x4a0] sm:$0xff]
        %v438 = vld [vmem:[#allocation3 + $0x4a8] sm:$0xff]
        %v439 = vld [vmem:[#allocation3 + $0x4b0] sm:$0xff]
        %v440 = vld [vmem:[#allocation3 + $0x4b8] sm:$0xff]
        %v441 = vld [vmem:[#allocation3 + $0x4c0] sm:$0xff]
        %v442 = vld [vmem:[#allocation3 + $0x4c8] sm:$0xff]
        %v443 = vld [vmem:[#allocation3 + $0x4d0] sm:$0xff]
        %v444 = vld [vmem:[#allocation3 + $0x4d8] sm:$0xff]
        %v445 = vld [vmem:[#allocation3 + $0x4e0] sm:$0xff]
        %v446 = vld [vmem:[#allocation3 + $0x4e8] sm:$0xff]
        %v447 = vld [vmem:[#allocation3 + $0x4f0] sm:$0xff]
        %v448 = vld [vmem:[#allocation3 + $0x4f8] sm:$0xff]
        %v449 = vld [vmem:[#allocation3 + $0x500] sm:$0xff]
        %v450 = vld [vmem:[#allocation3 + $0x508] sm:$0xff]
        %v451 = vld [vmem:[#allocation3 + $0x510] sm:$0xff]
        %v452 = vld [vmem:[#allocation3 + $0x518] sm:$0xff]
        %v453 = vld [vmem:[#allocation3 + $0x520] sm:$0xff]
        %v454 = vld [vmem:[#allocation3 + $0x528] sm:$0xff]
        %v455 = vld [vmem:[#allocation3 + $0x530] sm:$0xff]
        %v456 = vld [vmem:[#allocation3 + $0x538] sm:$0xff]
        %v457 = vld [vmem:[#allocation3 + $0x540] sm:$0xff]
        %v458 = vld [vmem:[#allocation3 + $0x548] sm:$0xff]
        %v459 = vld [vmem:[#allocation3 + $0x550] sm:$0xff]
        %v460 = vld [vmem:[#allocation3 + $0x558] sm:$0xff]
        %v461 = vld [vmem:[#allocation3 + $0x560] sm:$0xff]
        %v462 = vld [vmem:[#allocation3 + $0x568] sm:$0xff]
        %v463 = vld [vmem:[#allocation3 + $0x570] sm:$0xff]
        %v464 = vld [vmem:[#allocation3 + $0x578] sm:$0xff]
        %v465 = vld [vmem:[#allocation3 + $0x580] sm:$0xff]
        %v466 = vld [vmem:[#allocation3 + $0x588] sm:$0xff]
        %v467 = vld [vmem:[#allocation3 + $0x590] sm:$0xff]
        %v468 = vld [vmem:[#allocation3 + $0x598] sm:$0xff]
        %v469 = vld [vmem:[#allocation3 + $0x5a0] sm:$0xff]
        %v470 = vld [vmem:[#allocation3 + $0x5a8] sm:$0xff]
        %v471 = vld [vmem:[#allocation3 + $0x5b0] sm:$0xff]
        %v472 = vld [vmem:[#allocation3 + $0x5b8] sm:$0xff]
        %v473 = vld [vmem:[#allocation3 + $0x5c0] sm:$0xff]
        %v474 = vld [vmem:[#allocation3 + $0x5c8] sm:$0xff]
        %v475 = vld [vmem:[#allocation3 + $0x5d0] sm:$0xff]
        %v476 = vld [vmem:[#allocation3 + $0x5d8] sm:$0xff]
        %v477 = vld [vmem:[#allocation3 + $0x5e0] sm:$0xff]
        %v478 = vld [vmem:[#allocation3 + $0x5e8] sm:$0xff]
        %v479 = vld [vmem:[#allocation3 + $0x5f0] sm:$0xff]
        %v480 = vld [vmem:[#allocation3 + $0x5f8] sm:$0xff]
        %v481 = vld [vmem:[#allocation3 + $0x600] sm:$0xff]
        %v482 = vld [vmem:[#allocation3 + $0x608] sm:$0xff]
        %v483 = vld [vmem:[#allocation3 + $0x610] sm:$0xff]
        %v484 = vld [vmem:[#allocation3 + $0x618] sm:$0xff]
        %v485 = vld [vmem:[#allocation3 + $0x620] sm:$0xff]
        %v486 = vld [vmem:[#allocation3 + $0x628] sm:$0xff]
        %v487 = vld [vmem:[#allocation3 + $0x630] sm:$0xff]
        %v488 = vld [vmem:[#allocation3 + $0x638] sm:$0xff]
        %v489 = vld [vmem:[#allocation3 + $0x640] sm:$0xff]
        %v490 = vld [vmem:[#allocation3 + $0x648] sm:$0xff]
        %v491 = vld [vmem:[#allocation3 + $0x650] sm:$0xff]
        %v492 = vld [vmem:[#allocation3 + $0x658] sm:$0xff]
        %v493 = vld [vmem:[#allocation3 + $0x660] sm:$0xff]
        %v494 = vld [vmem:[#allocation3 + $0x668] sm:$0xff]
        %v495 = vld [vmem:[#allocation3 + $0x670] sm:$0xff]
        %v496 = vld [vmem:[#allocation3 + $0x678] sm:$0xff]
        %v497 = vld [vmem:[#allocation3 + $0x680] sm:$0xff]
        %v498 = vld [vmem:[#allocation3 + $0x688] sm:$0xff]
        %v499 = vld [vmem:[#allocation3 + $0x690] sm:$0xff]
        %v500 = vld [vmem:[#allocation3 + $0x698] sm:$0xff]
        %v501 = vld [vmem:[#allocation3 + $0x6a0] sm:$0xff]
        %v502 = vld [vmem:[#allocation3 + $0x6a8] sm:$0xff]
        %v503 = vld [vmem:[#allocation3 + $0x6b0] sm:$0xff]
        %v504 = vld [vmem:[#allocation3 + $0x6b8] sm:$0xff]
        %v505 = vld [vmem:[#allocation3 + $0x6c0] sm:$0xff]
        %v506 = vld [vmem:[#allocation3 + $0x6c8] sm:$0xff]
        %v507 = vld [vmem:[#allocation3 + $0x6d0] sm:$0xff]
        %v508 = vld [vmem:[#allocation3 + $0x6d8] sm:$0xff]
        %v509 = vld [vmem:[#allocation3 + $0x6e0] sm:$0xff]
        %v510 = vld [vmem:[#allocation3 + $0x6e8] sm:$0xff]
        %v511 = vld [vmem:[#allocation3 + $0x6f0] sm:$0xff]
        %v512 = vld [vmem:[#allocation3 + $0x6f8] sm:$0xff]
        %v513 = vld [vmem:[#allocation3 + $0x700] sm:$0xff]
        %v514 = vld [vmem:[#allocation3 + $0x708] sm:$0xff]
        %v515 = vld [vmem:[#allocation3 + $0x710] sm:$0xff]
        %v516 = vld [vmem:[#allocation3 + $0x718] sm:$0xff]
        %v517 = vld [vmem:[#allocation3 + $0x720] sm:$0xff]
        %v518 = vld [vmem:[#allocation3 + $0x728] sm:$0xff]
        %v519 = vld [vmem:[#allocation3 + $0x730] sm:$0xff]
        %v520 = vld [vmem:[#allocation3 + $0x738] sm:$0xff]
        %v521 = vld [vmem:[#allocation3 + $0x740] sm:$0xff]
        %v522 = vld [vmem:[#allocation3 + $0x748] sm:$0xff]
        %v523 = vld [vmem:[#allocation3 + $0x750] sm:$0xff]
        %v524 = vld [vmem:[#allocation3 + $0x758] sm:$0xff]
        %v525 = vld [vmem:[#allocation3 + $0x760] sm:$0xff]
        %v526 = vld [vmem:[#allocation3 + $0x768] sm:$0xff]
        %v527 = vld [vmem:[#allocation3 + $0x770] sm:$0xff]
        %v528 = vld [vmem:[#allocation3 + $0x778] sm:$0xff]
        %v529 = vld [vmem:[#allocation3 + $0x780] sm:$0xff]
        %v530 = vld [vmem:[#allocation3 + $0x788] sm:$0xff]
        %v531 = vld [vmem:[#allocation3 + $0x790] sm:$0xff]
        %v532 = vld [vmem:[#allocation3 + $0x798] sm:$0xff]
        %v533 = vld [vmem:[#allocation3 + $0x7a0] sm:$0xff]
        %v534 = vld [vmem:[#allocation3 + $0x7a8] sm:$0xff]
        %v535 = vld [vmem:[#allocation3 + $0x7b0] sm:$0xff]
        %v536 = vld [vmem:[#allocation3 + $0x7b8] sm:$0xff]
        %v537 = vld [vmem:[#allocation3 + $0x7c0] sm:$0xff]
        %v538 = vld [vmem:[#allocation3 + $0x7c8] sm:$0xff]
        %v539 = vld [vmem:[#allocation3 + $0x7d0] sm:$0xff]
        %v540 = vld [vmem:[#allocation3 + $0x7d8] sm:$0xff]
        %v541 = vld [vmem:[#allocation3 + $0x7e0] sm:$0xff]
        %v542 = vld [vmem:[#allocation3 + $0x7e8] sm:$0xff]
        %v543 = vld [vmem:[#allocation3 + $0x7f0] sm:$0xff]
        %v544 = vld [vmem:[#allocation3 + $0x7f8] sm:$0xff]
        %v545 = vld [vmem:[#allocation3 + $0x800] sm:$0xff]
        %v546 = vld [vmem:[#allocation3 + $0x808] sm:$0xff]
        %v547 = vld [vmem:[#allocation3 + $0x810] sm:$0xff]
        %v548 = vld [vmem:[#allocation3 + $0x818] sm:$0xff]
        %v549 = vld [vmem:[#allocation3 + $0x820] sm:$0xff]
        %v550 = vld [vmem:[#allocation3 + $0x828] sm:$0xff]
        %v551 = vld [vmem:[#allocation3 + $0x830] sm:$0xff]
        %v552 = vld [vmem:[#allocation3 + $0x838] sm:$0xff]
        %v553 = vld [vmem:[#allocation3 + $0x840] sm:$0xff]
        %v554 = vld [vmem:[#allocation3 + $0x848] sm:$0xff]
        %v555 = vld [vmem:[#allocation3 + $0x850] sm:$0xff]
        %v556 = vld [vmem:[#allocation3 + $0x858] sm:$0xff]
        %v557 = vld [vmem:[#allocation3 + $0x860] sm:$0xff]
        %v558 = vld [vmem:[#allocation3 + $0x868] sm:$0xff]
        %v559 = vld [vmem:[#allocation3 + $0x870] sm:$0xff]
        %v560 = vld [vmem:[#allocation3 + $0x878] sm:$0xff]
        %v561 = vld [vmem:[#allocation3 + $0x880] sm:$0xff]
        %v562 = vld [vmem:[#allocation3 + $0x888] sm:$0xff]
        %v563 = vld [vmem:[#allocation3 + $0x890] sm:$0xff]
        %v564 = vld [vmem:[#allocation3 + $0x898] sm:$0xff]
        %v565 = vld [vmem:[#allocation3 + $0x8a0] sm:$0xff]
        %v566 = vld [vmem:[#allocation3 + $0x8a8] sm:$0xff]
        %v567 = vld [vmem:[#allocation3 + $0x8b0] sm:$0xff]
        %v568 = vld [vmem:[#allocation3 + $0x8b8] sm:$0xff]
        %v569 = vld [vmem:[#allocation3 + $0x8c0] sm:$0xff]
        %v570 = vld [vmem:[#allocation3 + $0x8c8] sm:$0xff]
        %v571 = vld [vmem:[#allocation3 + $0x8d0] sm:$0xff]
        %v572 = vld [vmem:[#allocation3 + $0x8d8] sm:$0xff]
        %v573 = vld [vmem:[#allocation3 + $0x8e0] sm:$0xff]
        %v574 = vld [vmem:[#allocation3 + $0x8e8] sm:$0xff]
        %v575 = vld [vmem:[#allocation3 + $0x8f0] sm:$0xff]
        %v576 = vld [vmem:[#allocation3 + $0x8f8] sm:$0xff]
        %v577 = vld [vmem:[#allocation3 + $0x900] sm:$0xff]
        %v578 = vld [vmem:[#allocation3 + $0x908] sm:$0xff]
        %v579 = vld [vmem:[#allocation3 + $0x910] sm:$0xff]
        %v580 = vld [vmem:[#allocation3 + $0x918] sm:$0xff]
        %v581 = vld [vmem:[#allocation3 + $0x920] sm:$0xff]
        %v582 = vld [vmem:[#allocation3 + $0x928] sm:$0xff]
        %v583 = vld [vmem:[#allocation3 + $0x930] sm:$0xff]
        %v584 = vld [vmem:[#allocation3 + $0x938] sm:$0xff]
        %v585 = vld [vmem:[#allocation3 + $0x940] sm:$0xff]
        %v586 = vld [vmem:[#allocation3 + $0x948] sm:$0xff]
        %v587 = vld [vmem:[#allocation3 + $0x950] sm:$0xff]
        %v588 = vld [vmem:[#allocation3 + $0x958] sm:$0xff]
        %v589 = vld [vmem:[#allocation3 + $0x960] sm:$0xff]
        %v590 = vld [vmem:[#allocation3 + $0x968] sm:$0xff]
        %v591 = vld [vmem:[#allocation3 + $0x970] sm:$0xff]
        %v592 = vld [vmem:[#allocation3 + $0x978] sm:$0xff]
        %v593 = vld [vmem:[#allocation3 + $0x980] sm:$0xff]
        %v594 = vld [vmem:[#allocation3 + $0x988] sm:$0xff]
        %v595 = vld [vmem:[#allocation3 + $0x990] sm:$0xff]
        %v596 = vld [vmem:[#allocation3 + $0x998] sm:$0xff]
        %v597 = vld [vmem:[#allocation3 + $0x9a0] sm:$0xff]
        %v598 = vld [vmem:[#allocation3 + $0x9a8] sm:$0xff]
        %v599 = vld [vmem:[#allocation3 + $0x9b0] sm:$0xff]
        %v600 = vld [vmem:[#allocation3 + $0x9b8] sm:$0xff]
        %v601 = vld [vmem:[#allocation3 + $0x9c0] sm:$0xff]
        %v602 = vld [vmem:[#allocation3 + $0x9c8] sm:$0xff]
        %v603 = vld [vmem:[#allocation3 + $0x9d0] sm:$0xff]
        %v604 = vld [vmem:[#allocation3 + $0x9d8] sm:$0xff]
        %v605 = vld [vmem:[#allocation3 + $0x9e0] sm:$0xff]
        %v606 = vld [vmem:[#allocation3 + $0x9e8] sm:$0xff]
        %v607 = vld [vmem:[#allocation3 + $0x9f0] sm:$0xff]
        %v608 = vld [vmem:[#allocation3 + $0x9f8] sm:$0xff]
        %v609 = vld [vmem:[#allocation3 + $0xa00] sm:$0xff]
        %v610 = vld [vmem:[#allocation3 + $0xa08] sm:$0xff]
        %v611 = vld [vmem:[#allocation3 + $0xa10] sm:$0xff]
        %v612 = vld [vmem:[#allocation3 + $0xa18] sm:$0xff]
        %v613 = vld [vmem:[#allocation3 + $0xa20] sm:$0xff]
        %v614 = vld [vmem:[#allocation3 + $0xa28] sm:$0xff]
        %v615 = vld [vmem:[#allocation3 + $0xa30] sm:$0xff]
        %v616 = vld [vmem:[#allocation3 + $0xa38] sm:$0xff]
        %v617 = vld [vmem:[#allocation3 + $0xa40] sm:$0xff]
        %v618 = vld [vmem:[#allocation3 + $0xa48] sm:$0xff]
        %v619 = vld [vmem:[#allocation3 + $0xa50] sm:$0xff]
        %v620 = vld [vmem:[#allocation3 + $0xa58] sm:$0xff]
        %v621 = vld [vmem:[#allocation3 + $0xa60] sm:$0xff]
        %v622 = vld [vmem:[#allocation3 + $0xa68] sm:$0xff]
        %v623 = vld [vmem:[#allocation3 + $0xa70] sm:$0xff]
        %v624 = vld [vmem:[#allocation3 + $0xa78] sm:$0xff]
        %v625 = vld [vmem:[#allocation3 + $0xa80] sm:$0xff]
        %v626 = vld [vmem:[#allocation3 + $0xa88] sm:$0xff]
        %v627 = vld [vmem:[#allocation3 + $0xa90] sm:$0xff]
        %v628 = vld [vmem:[#allocation3 + $0xa98] sm:$0xff]
        %v629 = vld [vmem:[#allocation3 + $0xaa0] sm:$0xff]
        %v630 = vld [vmem:[#allocation3 + $0xaa8] sm:$0xff]
        %v631 = vld [vmem:[#allocation3 + $0xab0] sm:$0xff]
        %v632 = vld [vmem:[#allocation3 + $0xab8] sm:$0xff]
        %v633 = vld [vmem:[#allocation3 + $0xac0] sm:$0xff]
        %v634 = vld [vmem:[#allocation3 + $0xac8] sm:$0xff]
        %v635 = vld [vmem:[#allocation3 + $0xad0] sm:$0xff]
        %v636 = vld [vmem:[#allocation3 + $0xad8] sm:$0xff]
        %v637 = vld [vmem:[#allocation3 + $0xae0] sm:$0xff]
        %v638 = vld [vmem:[#allocation3 + $0xae8] sm:$0xff]
        %v639 = vld [vmem:[#allocation3 + $0xaf0] sm:$0xff]
        %v640 = vld [vmem:[#allocation3 + $0xaf8] sm:$0xff]
        %v641 = vld [vmem:[#allocation3 + $0xb00] sm:$0xff]
        %v642 = vld [vmem:[#allocation3 + $0xb08] sm:$0xff]
        %v643 = vld [vmem:[#allocation3 + $0xb10] sm:$0xff]
        %v644 = vld [vmem:[#allocation3 + $0xb18] sm:$0xff]
        %v645 = vld [vmem:[#allocation3 + $0xb20] sm:$0xff]
        %v646 = vld [vmem:[#allocation3 + $0xb28] sm:$0xff]
        %v647 = vld [vmem:[#allocation3 + $0xb30] sm:$0xff]
        %v648 = vld [vmem:[#allocation3 + $0xb38] sm:$0xff]
        %v649 = vld [vmem:[#allocation3 + $0xb40] sm:$0xff]
        %v650 = vld [vmem:[#allocation3 + $0xb48] sm:$0xff]
        %v651 = vld [vmem:[#allocation3 + $0xb50] sm:$0xff]
        %v652 = vld [vmem:[#allocation3 + $0xb58] sm:$0xff]
        %v653 = vld [vmem:[#allocation3 + $0xb60] sm:$0xff]
        %v654 = vld [vmem:[#allocation3 + $0xb68] sm:$0xff]
        %v655 = vld [vmem:[#allocation3 + $0xb70] sm:$0xff]
        %v656 = vld [vmem:[#allocation3 + $0xb78] sm:$0xff]
        %v657 = vld [vmem:[#allocation3 + $0xb80] sm:$0xff]
        %v658 = vld [vmem:[#allocation3 + $0xb88] sm:$0xff]
        %v659 = vld [vmem:[#allocation3 + $0xb90] sm:$0xff]
        %v660 = vld [vmem:[#allocation3 + $0xb98] sm:$0xff]
        %v661 = vld [vmem:[#allocation3 + $0xba0] sm:$0xff]
        %v662 = vld [vmem:[#allocation3 + $0xba8] sm:$0xff]
        %v663 = vld [vmem:[#allocation3 + $0xbb0] sm:$0xff]
        %v664 = vld [vmem:[#allocation3 + $0xbb8] sm:$0xff]
        %v665 = vld [vmem:[#allocation3 + $0xbc0] sm:$0xff]
        %v666 = vld [vmem:[#allocation3 + $0xbc8] sm:$0xff]
        %v667 = vld [vmem:[#allocation3 + $0xbd0] sm:$0xff]
        %v668 = vld [vmem:[#allocation3 + $0xbd8] sm:$0xff]
        %v669 = vld [vmem:[#allocation3 + $0xbe0] sm:$0xff]
        %v670 = vld [vmem:[#allocation3 + $0xbe8] sm:$0xff]
        %v671 = vld [vmem:[#allocation3 + $0xbf0] sm:$0xff]
        %v672 = vld [vmem:[#allocation3 + $0xbf8] sm:$0xff]
        %673 = vmatprep.subr.mxu0 %v290
        %674 = vmatpush1.msra.mxu0 %v289
        %675 = vmatprep.subr.mxu0 %v296
        %676 = vmatpush1.msra.mxu0 %v295
        %677 = vmatprep.subr.mxu0 %v302
        %678 = vmatpush1.msra.mxu0 %v301
        %679 = vmatprep.subr.mxu0 %v308
        %680 = vmatpush1.msra.mxu0 %v307
        %681 = vmatprep.subr.mxu0 %v314
        %682 = vmatpush1.msra.mxu0 %v313
        %683 = vmatprep.subr.mxu0 %v320
        %684 = vmatpush1.msra.mxu0 %v319
        %685 = vmatprep.subr.mxu0 %v326
        %686 = vmatpush1.msra.mxu0 %v325
        %687 = vmatprep.subr.mxu0 %v332
        %688 = vmatpush1.msra.mxu0 %v331
        %689 = vmatprep.subr.mxu0 %v338
        %690 = vmatpush1.msra.mxu0 %v337
        %691 = vmatprep.subr.mxu0 %v344
        %692 = vmatpush1.msra.mxu0 %v343
        %693 = vmatprep.subr.mxu0 %v350
        %694 = vmatpush1.msra.mxu0 %v349
        %695 = vmatprep.subr.mxu0 %v356
        %696 = vmatpush1.msra.mxu0 %v355
        %697 = vmatprep.subr.mxu0 %v362
        %698 = vmatpush1.msra.mxu0 %v361
        %699 = vmatprep.subr.mxu0 %v368
        %700 = vmatpush1.msra.mxu0 %v367
        %701 = vmatprep.subr.mxu0 %v374
        %702 = vmatpush1.msra.mxu0 %v373
        %703 = vmatprep.subr.mxu0 %v380
        %704 = vmatpush1.msra.mxu0 %v379
        %705 = vmatprep.subr.mxu0 %v386
        %706 = vmatpush1.msra.mxu0 %v385
        %707 = vmatprep.subr.mxu0 %v392
        %708 = vmatpush1.msra.mxu0 %v391
        %709 = vmatprep.subr.mxu0 %v398
        %710 = vmatpush1.msra.mxu0 %v397
        %711 = vmatprep.subr.mxu0 %v404
        %712 = vmatpush1.msra.mxu0 %v403
        %713 = vmatprep.subr.mxu0 %v410
        %714 = vmatpush1.msra.mxu0 %v409
        %715 = vmatprep.subr.mxu0 %v416
        %716 = vmatpush1.msra.mxu0 %v415
        %717 = vmatprep.subr.mxu0 %v422
        %718 = vmatpush1.msra.mxu0 %v421
        %719 = vmatprep.subr.mxu0 %v428
        %720 = vmatpush1.msra.mxu0 %v427
        %721 = vmatprep.subr.mxu0 %v434
        %722 = vmatpush1.msra.mxu0 %v433
        %723 = vmatprep.subr.mxu0 %v440
        %724 = vmatpush1.msra.mxu0 %v439
        %725 = vmatprep.subr.mxu0 %v446
        %726 = vmatpush1.msra.mxu0 %v445
        %727 = vmatprep.subr.mxu0 %v452
        %728 = vmatpush1.msra.mxu0 %v451
        %729 = vmatprep.subr.mxu0 %v458
        %730 = vmatpush1.msra.mxu0 %v457
        %731 = vmatprep.subr.mxu0 %v464
        %732 = vmatpush1.msra.mxu0 %v463
        %733 = vmatprep.subr.mxu0 %v470
        %734 = vmatpush1.msra.mxu0 %v469
        %735 = vmatprep.subr.mxu0 %v476
        %736 = vmatpush1.msra.mxu0 %v475
        %737 = vmatprep.mubr.f32.mxu0 %v280
        %738 = vmatmul.mubr.f32.gmra.mrb[0].mxu0 %v279
        %v739 = vpop.f32.mrb[0].mxu0
        %v740 = vadd.f32 0.0, %v739
        %v741 = vpop.f32.mrb[0].mxu0
        %v742 = vadd.f32 0.0, %v741
        %743 = vdwg.mxu0
        %744 = vmatprep.subr.mxu0 %v482
        %745 = vmatpush1.msra.mxu0 %v481
        %746 = vmatprep.subr.mxu0 %v488
        %747 = vmatpush1.msra.mxu0 %v487
        %748 = vmatprep.subr.mxu0 %v494
        %749 = vmatpush1.msra.mxu0 %v493
        %750 = vmatprep.subr.mxu0 %v500
        %751 = vmatpush1.msra.mxu0 %v499
        %752 = vmatprep.subr.mxu0 %v506
        %753 = vmatpush1.msra.mxu0 %v505
        %754 = vmatprep.subr.mxu0 %v512
        %755 = vmatpush1.msra.mxu0 %v511
        %756 = vmatprep.subr.mxu0 %v518
        %757 = vmatpush1.msra.mxu0 %v517
        %758 = vmatprep.subr.mxu0 %v524
        %759 = vmatpush1.msra.mxu0 %v523
        %760 = vmatprep.subr.mxu0 %v530
        %761 = vmatpush1.msra.mxu0 %v529
        %762 = vmatprep.subr.mxu0 %v536
        %763 = vmatpush1.msra.mxu0 %v535
        %764 = vmatprep.subr.mxu0 %v542
        %765 = vmatpush1.msra.mxu0 %v541
        %766 = vmatprep.subr.mxu0 %v548
        %767 = vmatpush1.msra.mxu0 %v547
        %768 = vmatprep.subr.mxu0 %v554
        %769 = vmatpush1.msra.mxu0 %v553
        %770 = vmatprep.subr.mxu0 %v560
        %771 = vmatpush1.msra.mxu0 %v559
        %772 = vmatprep.subr.mxu0 %v566
        %773 = vmatpush1.msra.mxu0 %v565
        %774 = vmatprep.subr.mxu0 %v572
        %775 = vmatpush1.msra.mxu0 %v571
        %776 = vmatprep.subr.mxu0 %v578
        %777 = vmatpush1.msra.mxu0 %v577
        %778 = vmatprep.subr.mxu0 %v584
        %779 = vmatpush1.msra.mxu0 %v583
        %780 = vmatprep.subr.mxu0 %v590
        %781 = vmatpush1.msra.mxu0 %v589
        %782 = vmatprep.subr.mxu0 %v596
        %783 = vmatpush1.msra.mxu0 %v595
        %784 = vmatprep.subr.mxu0 %v602
        %785 = vmatpush1.msra.mxu0 %v601
        %786 = vmatprep.subr.mxu0 %v608
        %787 = vmatpush1.msra.mxu0 %v607
        %788 = vmatprep.subr.mxu0 %v614
        %789 = vmatpush1.msra.mxu0 %v613
        %790 = vmatprep.subr.mxu0 %v620
        %791 = vmatpush1.msra.mxu0 %v619
        %792 = vmatprep.subr.mxu0 %v626
        %793 = vmatpush1.msra.mxu0 %v625
        %794 = vmatprep.subr.mxu0 %v632
        %795 = vmatpush1.msra.mxu0 %v631
        %796 = vmatprep.subr.mxu0 %v638
        %797 = vmatpush1.msra.mxu0 %v637
        %798 = vmatprep.subr.mxu0 %v644
        %799 = vmatpush1.msra.mxu0 %v643
        %800 = vmatprep.subr.mxu0 %v650
        %801 = vmatpush1.msra.mxu0 %v649
        %802 = vmatprep.subr.mxu0 %v656
        %803 = vmatpush1.msra.mxu0 %v655
        %804 = vmatprep.subr.mxu0 %v662
        %805 = vmatpush1.msra.mxu0 %v661
        %806 = vmatprep.subr.mxu0 %v668
        %807 = vmatpush1.msra.mxu0 %v667
        %808 = vmatprep.mubr.f32.mxu0 %v282
        %809 = vmatmul.mubr.f32.gmra.mrb[0].mxu0 %v281
        %v810 = vpop.f32.mrb[0].mxu0
        %v811 = vadd.f32 %v740, %v810
        %v812 = vpop.f32.mrb[0].mxu0
        %v813 = vadd.f32 %v742, %v812
        %814 = vdwg.mxu0
        %815 = vmatprep.subr.mxu0 %v292
        %816 = vmatpush1.msra.mxu0 %v291
        %817 = vmatprep.subr.mxu0 %v298
        %818 = vmatpush1.msra.mxu0 %v297
        %819 = vmatprep.subr.mxu0 %v304
        %820 = vmatpush1.msra.mxu0 %v303
        %821 = vmatprep.subr.mxu0 %v310
        %822 = vmatpush1.msra.mxu0 %v309
        %823 = vmatprep.subr.mxu0 %v316
        %824 = vmatpush1.msra.mxu0 %v315
        %825 = vmatprep.subr.mxu0 %v322
        %826 = vmatpush1.msra.mxu0 %v321
        %827 = vmatprep.subr.mxu0 %v328
        %828 = vmatpush1.msra.mxu0 %v327
        %829 = vmatprep.subr.mxu0 %v334
        %830 = vmatpush1.msra.mxu0 %v333
        %831 = vmatprep.subr.mxu0 %v340
        %832 = vmatpush1.msra.mxu0 %v339
        %833 = vmatprep.subr.mxu0 %v346
        %834 = vmatpush1.msra.mxu0 %v345
        %835 = vmatprep.subr.mxu0 %v352
        %836 = vmatpush1.msra.mxu0 %v351
        %837 = vmatprep.subr.mxu0 %v358
        %838 = vmatpush1.msra.mxu0 %v357
        %839 = vmatprep.subr.mxu0 %v364
        %840 = vmatpush1.msra.mxu0 %v363
        %841 = vmatprep.subr.mxu0 %v370
        %842 = vmatpush1.msra.mxu0 %v369
        %843 = vmatprep.subr.mxu0 %v376
        %844 = vmatpush1.msra.mxu0 %v375
        %845 = vmatprep.subr.mxu0 %v382
        %846 = vmatpush1.msra.mxu0 %v381
        %847 = vmatprep.subr.mxu0 %v388
        %848 = vmatpush1.msra.mxu0 %v387
        %849 = vmatprep.subr.mxu0 %v394
        %850 = vmatpush1.msra.mxu0 %v393
        %851 = vmatprep.subr.mxu0 %v400
        %852 = vmatpush1.msra.mxu0 %v399
        %853 = vmatprep.subr.mxu0 %v406
        %854 = vmatpush1.msra.mxu0 %v405
        %855 = vmatprep.subr.mxu0 %v412
        %856 = vmatpush1.msra.mxu0 %v411
        %857 = vmatprep.subr.mxu0 %v418
        %858 = vmatpush1.msra.mxu0 %v417
        %859 = vmatprep.subr.mxu0 %v424
        %860 = vmatpush1.msra.mxu0 %v423
        %861 = vmatprep.subr.mxu0 %v430
        %862 = vmatpush1.msra.mxu0 %v429
        %863 = vmatprep.subr.mxu0 %v436
        %864 = vmatpush1.msra.mxu0 %v435
        %865 = vmatprep.subr.mxu0 %v442
        %866 = vmatpush1.msra.mxu0 %v441
        %867 = vmatprep.subr.mxu0 %v448
        %868 = vmatpush1.msra.mxu0 %v447
        %869 = vmatprep.subr.mxu0 %v454
        %870 = vmatpush1.msra.mxu0 %v453
        %871 = vmatprep.subr.mxu0 %v460
        %872 = vmatpush1.msra.mxu0 %v459
        %873 = vmatprep.subr.mxu0 %v466
        %874 = vmatpush1.msra.mxu0 %v465
        %875 = vmatprep.subr.mxu0 %v472
        %876 = vmatpush1.msra.mxu0 %v471
        %877 = vmatprep.subr.mxu0 %v478
        %878 = vmatpush1.msra.mxu0 %v477
        %879 = vmatprep.mubr.f32.mxu0 %v280
        %880 = vmatmul.mubr.f32.gmra.mrb[0].mxu0 %v279
        %v881 = vpop.f32.mrb[0].mxu0
        %v882 = vadd.f32 0.0, %v881
        %v883 = vpop.f32.mrb[0].mxu0
        %v884 = vadd.f32 0.0, %v883
        %885 = vdwg.mxu0
        %886 = vmatprep.subr.mxu0 %v484
        %887 = vmatpush1.msra.mxu0 %v483
        %888 = vmatprep.subr.mxu0 %v490
        %889 = vmatpush1.msra.mxu0 %v489
        %890 = vmatprep.subr.mxu0 %v496
        %891 = vmatpush1.msra.mxu0 %v495
        %892 = vmatprep.subr.mxu0 %v502
        %893 = vmatpush1.msra.mxu0 %v501
        %894 = vmatprep.subr.mxu0 %v508
        %895 = vmatpush1.msra.mxu0 %v507
        %896 = vmatprep.subr.mxu0 %v514
        %897 = vmatpush1.msra.mxu0 %v513
        %898 = vmatprep.subr.mxu0 %v520
        %899 = vmatpush1.msra.mxu0 %v519
        %900 = vmatprep.subr.mxu0 %v526
        %901 = vmatpush1.msra.mxu0 %v525
        %902 = vmatprep.subr.mxu0 %v532
        %903 = vmatpush1.msra.mxu0 %v531
        %904 = vmatprep.subr.mxu0 %v538
        %905 = vmatpush1.msra.mxu0 %v537
        %906 = vmatprep.subr.mxu0 %v544
        %907 = vmatpush1.msra.mxu0 %v543
        %908 = vmatprep.subr.mxu0 %v550
        %909 = vmatpush1.msra.mxu0 %v549
        %910 = vmatprep.subr.mxu0 %v556
        %911 = vmatpush1.msra.mxu0 %v555
        %912 = vmatprep.subr.mxu0 %v562
        %913 = vmatpush1.msra.mxu0 %v561
        %914 = vmatprep.subr.mxu0 %v568
        %915 = vmatpush1.msra.mxu0 %v567
        %916 = vmatprep.subr.mxu0 %v574
        %917 = vmatpush1.msra.mxu0 %v573
        %918 = vmatprep.subr.mxu0 %v580
        %919 = vmatpush1.msra.mxu0 %v579
        %920 = vmatprep.subr.mxu0 %v586
        %921 = vmatpush1.msra.mxu0 %v585
        %922 = vmatprep.subr.mxu0 %v592
        %923 = vmatpush1.msra.mxu0 %v591
        %924 = vmatprep.subr.mxu0 %v598
        %925 = vmatpush1.msra.mxu0 %v597
        %926 = vmatprep.subr.mxu0 %v604
        %927 = vmatpush1.msra.mxu0 %v603
        %928 = vmatprep.subr.mxu0 %v610
        %929 = vmatpush1.msra.mxu0 %v609
        %930 = vmatprep.subr.mxu0 %v616
        %931 = vmatpush1.msra.mxu0 %v615
        %932 = vmatprep.subr.mxu0 %v622
        %933 = vmatpush1.msra.mxu0 %v621
        %934 = vmatprep.subr.mxu0 %v628
        %935 = vmatpush1.msra.mxu0 %v627
        %936 = vmatprep.subr.mxu0 %v634
        %937 = vmatpush1.msra.mxu0 %v633
        %938 = vmatprep.subr.mxu0 %v640
        %939 = vmatpush1.msra.mxu0 %v639
        %940 = vmatprep.subr.mxu0 %v646
        %941 = vmatpush1.msra.mxu0 %v645
        %942 = vmatprep.subr.mxu0 %v652
        %943 = vmatpush1.msra.mxu0 %v651
        %944 = vmatprep.subr.mxu0 %v658
        %945 = vmatpush1.msra.mxu0 %v657
        %946 = vmatprep.subr.mxu0 %v664
        %947 = vmatpush1.msra.mxu0 %v663
        %948 = vmatprep.subr.mxu0 %v670
        %949 = vmatpush1.msra.mxu0 %v669
        %950 = vmatprep.mubr.f32.mxu0 %v282
        %951 = vmatmul.mubr.f32.gmra.mrb[0].mxu0 %v281
        %v952 = vpop.f32.mrb[0].mxu0
        %v953 = vadd.f32 %v882, %v952
        %v954 = vpop.f32.mrb[0].mxu0
        %v955 = vadd.f32 %v884, %v954
        %956 = vdwg.mxu0
        %957 = vmatprep.subr.mxu0 %v294
        %958 = vmatpush1.msra.mxu0 %v293
        %959 = vmatprep.subr.mxu0 %v300
        %960 = vmatpush1.msra.mxu0 %v299
        %961 = vmatprep.subr.mxu0 %v306
        %962 = vmatpush1.msra.mxu0 %v305
        %963 = vmatprep.subr.mxu0 %v312
        %964 = vmatpush1.msra.mxu0 %v311
        %965 = vmatprep.subr.mxu0 %v318
        %966 = vmatpush1.msra.mxu0 %v317
        %967 = vmatprep.subr.mxu0 %v324
        %968 = vmatpush1.msra.mxu0 %v323
        %969 = vmatprep.subr.mxu0 %v330
        %970 = vmatpush1.msra.mxu0 %v329
        %971 = vmatprep.subr.mxu0 %v336
        %972 = vmatpush1.msra.mxu0 %v335
        %973 = vmatprep.subr.mxu0 %v342
        %974 = vmatpush1.msra.mxu0 %v341
        %975 = vmatprep.subr.mxu0 %v348
        %976 = vmatpush1.msra.mxu0 %v347
        %977 = vmatprep.subr.mxu0 %v354
        %978 = vmatpush1.msra.mxu0 %v353
        %979 = vmatprep.subr.mxu0 %v360
        %980 = vmatpush1.msra.mxu0 %v359
        %981 = vmatprep.subr.mxu0 %v366
        %982 = vmatpush1.msra.mxu0 %v365
        %983 = vmatprep.subr.mxu0 %v372
        %984 = vmatpush1.msra.mxu0 %v371
        %985 = vmatprep.subr.mxu0 %v378
        %986 = vmatpush1.msra.mxu0 %v377
        %987 = vmatprep.subr.mxu0 %v384
        %988 = vmatpush1.msra.mxu0 %v383
        %989 = vmatprep.subr.mxu0 %v390
        %990 = vmatpush1.msra.mxu0 %v389
        %991 = vmatprep.subr.mxu0 %v396
        %992 = vmatpush1.msra.mxu0 %v395
        %993 = vmatprep.subr.mxu0 %v402
        %994 = vmatpush1.msra.mxu0 %v401
        %995 = vmatprep.subr.mxu0 %v408
        %996 = vmatpush1.msra.mxu0 %v407
        %997 = vmatprep.subr.mxu0 %v414
        %998 = vmatpush1.msra.mxu0 %v413
        %999 = vmatprep.subr.mxu0 %v420
        %1000 = vmatpush1.msra.mxu0 %v419
        %1001 = vmatprep.subr.mxu0 %v426
        %1002 = vmatpush1.msra.mxu0 %v425
        %1003 = vmatprep.subr.mxu0 %v432
        %1004 = vmatpush1.msra.mxu0 %v431
        %1005 = vmatprep.subr.mxu0 %v438
        %1006 = vmatpush1.msra.mxu0 %v437
        %1007 = vmatprep.subr.mxu0 %v444
        %1008 = vmatpush1.msra.mxu0 %v443
        %1009 = vmatprep.subr.mxu0 %v450
        %1010 = vmatpush1.msra.mxu0 %v449
        %1011 = vmatprep.subr.mxu0 %v456
        %1012 = vmatpush1.msra.mxu0 %v455
        %1013 = vmatprep.subr.mxu0 %v462
        %1014 = vmatpush1.msra.mxu0 %v461
        %1015 = vmatprep.subr.mxu0 %v468
        %1016 = vmatpush1.msra.mxu0 %v467
        %1017 = vmatprep.subr.mxu0 %v474
        %1018 = vmatpush1.msra.mxu0 %v473
        %1019 = vmatprep.subr.mxu0 %v480
        %1020 = vmatpush1.msra.mxu0 %v479
        %1021 = vmatprep.mubr.f32.mxu0 %v280
        %1022 = vmatmul.mubr.f32.gmra.mrb[0].mxu0 %v279
        %v1023 = vpop.f32.mrb[0].mxu0
        %v1024 = vadd.f32 0.0, %v1023
        %v1025 = vpop.f32.mrb[0].mxu0
        %v1026 = vadd.f32 0.0, %v1025
        %1027 = vdwg.mxu0
        %1028 = vmatprep.subr.mxu0 %v486
        %1029 = vmatpush1.msra.mxu0 %v485
        %1030 = vmatprep.subr.mxu0 %v492
        %1031 = vmatpush1.msra.mxu0 %v491
        %1032 = vmatprep.subr.mxu0 %v498
        %1033 = vmatpush1.msra.mxu0 %v497
        %1034 = vmatprep.subr.mxu0 %v504
        %1035 = vmatpush1.msra.mxu0 %v503
        %1036 = vmatprep.subr.mxu0 %v510
        %1037 = vmatpush1.msra.mxu0 %v509
        %1038 = vmatprep.subr.mxu0 %v516
        %1039 = vmatpush1.msra.mxu0 %v515
        %1040 = vmatprep.subr.mxu0 %v522
        %1041 = vmatpush1.msra.mxu0 %v521
        %1042 = vmatprep.subr.mxu0 %v528
        %1043 = vmatpush1.msra.mxu0 %v527
        %1044 = vmatprep.subr.mxu0 %v534
        %1045 = vmatpush1.msra.mxu0 %v533
        %1046 = vmatprep.subr.mxu0 %v540
        %1047 = vmatpush1.msra.mxu0 %v539
        %1048 = vmatprep.subr.mxu0 %v546
        %1049 = vmatpush1.msra.mxu0 %v545
        %1050 = vmatprep.subr.mxu0 %v552
        %1051 = vmatpush1.msra.mxu0 %v551
        %1052 = vmatprep.subr.mxu0 %v558
        %1053 = vmatpush1.msra.mxu0 %v557
        %1054 = vmatprep.subr.mxu0 %v564
        %1055 = vmatpush1.msra.mxu0 %v563
        %1056 = vmatprep.subr.mxu0 %v570
        %1057 = vmatpush1.msra.mxu0 %v569
        %1058 = vmatprep.subr.mxu0 %v576
        %1059 = vmatpush1.msra.mxu0 %v575
        %1060 = vmatprep.subr.mxu0 %v582
        %1061 = vmatpush1.msra.mxu0 %v581
        %1062 = vmatprep.subr.mxu0 %v588
        %1063 = vmatpush1.msra.mxu0 %v587
        %1064 = vmatprep.subr.mxu0 %v594
        %1065 = vmatpush1.msra.mxu0 %v593
        %1066 = vmatprep.subr.mxu0 %v600
        %1067 = vmatpush1.msra.mxu0 %v599
        %1068 = vmatprep.subr.mxu0 %v606
        %1069 = vmatpush1.msra.mxu0 %v605
        %1070 = vmatprep.subr.mxu0 %v612
        %1071 = vmatpush1.msra.mxu0 %v611
        %1072 = vmatprep.subr.mxu0 %v618
        %1073 = vmatpush1.msra.mxu0 %v617
        %1074 = vmatprep.subr.mxu0 %v624
        %1075 = vmatpush1.msra.mxu0 %v623
        %1076 = vmatprep.subr.mxu0 %v630
        %1077 = vmatpush1.msra.mxu0 %v629
        %1078 = vmatprep.subr.mxu0 %v636
        %1079 = vmatpush1.msra.mxu0 %v635
        %1080 = vmatprep.subr.mxu0 %v642
        %1081 = vmatpush1.msra.mxu0 %v641
        %1082 = vmatprep.subr.mxu0 %v648
        %1083 = vmatpush1.msra.mxu0 %v647
        %1084 = vmatprep.subr.mxu0 %v654
        %1085 = vmatpush1.msra.mxu0 %v653
        %1086 = vmatprep.subr.mxu0 %v660
        %1087 = vmatpush1.msra.mxu0 %v659
        %1088 = vmatprep.subr.mxu0 %v666
        %1089 = vmatpush1.msra.mxu0 %v665
        %1090 = vmatprep.subr.mxu0 %v672
        %1091 = vmatpush1.msra.mxu0 %v671
        %1092 = vmatprep.mubr.f32.mxu0 %v282
        %1093 = vmatmul.mubr.f32.gmra.mrb[0].mxu0 %v281
        %v1094 = vpop.f32.mrb[0].mxu0
        %v1095 = vadd.f32 %v1024, %v1094
        %v1096 = vpop.f32.mrb[0].mxu0
        %v1097 = vadd.f32 %v1026, %v1096
        %1098 = vdwg.mxu0
        %v1099 = vadd.f32 %v283, %v811
        %v1100 = vadd.f32 %v284, %v813
        %v1101 = vadd.f32 %v285, %v953
        %v1102 = vadd.f32 %v286, %v955
        %v1103 = vadd.f32 %v287, %v1095
        %v1104 = vadd.f32 %v288, %v1097
        %v1105 = vxor.u32 %v1099, 2147483648
        %v1106 = vmul.f32 %v1105, 1.442695
        %v1107 = vpow.pop %v1106
        %v1108 = vadd.f32 %v1107, 1.0
        %v1109 = vrcp.pop %v1108
        %v1110 = vmul.f32 1.0, %v1109
        %v1111 = vxor.u32 %v1100, 2147483648
        %v1112 = vmul.f32 %v1111, 1.442695
        %v1113 = vpow.pop %v1112
        %v1114 = vadd.f32 %v1113, 1.0
        %v1115 = vrcp.pop %v1114
        %v1116 = vmul.f32 1.0, %v1115
        %v1117 = vmul.f32 %v1110, %v280
        %v1118 = vand.u32 2147483647, %v1101
        %v1119 = vadd.f32 %v1118, 1.0
        %v1120 = vrcp.pop %v1119
        %v1121 = vmul.f32 %v1101, %v1120
        %v1122 = vmul.f32 %v1116, %v1121
        %v1123 = vadd.f32 %v1117, %v1122
        %v1124 = vand.u32 2147483647, %v1102
        %v1125 = vadd.f32 %v1124, 1.0
        %v1126 = vrcp.pop %v1125
        %v1127 = vmul.f32 %v1102, %v1126
        %v1128 = vand.u32 2147483647, %v1103
        %v1129 = vadd.f32 %v1128, 1.0
        %v1130 = vrcp.pop %v1129
        %v1131 = vmul.f32 %v1103, %v1130
        %v1132 = vld [vmem:[#allocation6] sm:$0xff]
        %v1133 = vld [vmem:[#allocation6 + $0x8] sm:$0xff]
        %v1134 = vld [vmem:[#allocation6 + $0x10] sm:$0xff]
        %v1135 = vld [vmem:[#allocation6 + $0x18] sm:$0xff]
        %v1136 = vld [vmem:[#allocation6 + $0x20] sm:$0xff]
        %v1137 = vld [vmem:[#allocation6 + $0x28] sm:$0xff]
        %v1138 = vld [vmem:[#allocation6 + $0x30] sm:$0xff]
        %v1139 = vld [vmem:[#allocation6 + $0x38] sm:$0xff]
        %v1140 = vld [vmem:[#allocation6 + $0x40] sm:$0xff]
        %v1141 = vld [vmem:[#allocation6 + $0x48] sm:$0xff]
        %v1142 = vld [vmem:[#allocation6 + $0x50] sm:$0xff]
        %v1143 = vld [vmem:[#allocation6 + $0x58] sm:$0xff]
        %v1144 = vld [vmem:[#allocation6 + $0x60] sm:$0xff]
        %v1145 = vld [vmem:[#allocation6 + $0x68] sm:$0xff]
        %v1146 = vld [vmem:[#allocation6 + $0x70] sm:$0xff]
        %v1147 = vld [vmem:[#allocation6 + $0x78] sm:$0xff]
        %1148 = vmatprep.subr.mxu0 0.0
        %1149 = vmatpush1.msra.mxu0 %v1132
        %1150 = vmatprep.subr.mxu0 0.0
        %1151 = vmatpush1.msra.mxu0 %v1133
        %1152 = vmatprep.subr.mxu0 0.0
        %1153 = vmatpush1.msra.mxu0 %v1134
        %1154 = vmatprep.subr.mxu0 0.0
        %1155 = vmatpush1.msra.mxu0 %v1135
        %1156 = vmatprep.subr.mxu0 0.0
        %1157 = vmatpush1.msra.mxu0 %v1136
        %1158 = vmatprep.subr.mxu0 0.0
        %1159 = vmatpush1.msra.mxu0 %v1137
        %1160 = vmatprep.subr.mxu0 0.0
        %1161 = vmatpush1.msra.mxu0 %v1138
        %1162 = vmatprep.subr.mxu0 0.0
        %1163 = vmatpush1.msra.mxu0 %v1139
        %1164 = vmatprep.subr.mxu0 0.0
        %1165 = vmatpush1.msra.mxu0 %v1140
        %1166 = vmatprep.subr.mxu0 0.0
        %1167 = vmatpush1.msra.mxu0 %v1141
        %1168 = vmatprep.subr.mxu0 0.0
        %1169 = vmatpush1.msra.mxu0 %v1142
        %1170 = vmatprep.subr.mxu0 0.0
        %1171 = vmatpush1.msra.mxu0 %v1143
        %1172 = vmatprep.subr.mxu0 0.0
        %1173 = vmatpush1.msra.mxu0 %v1144
        %1174 = vmatprep.subr.mxu0 0.0
        %1175 = vmatpush1.msra.mxu0 %v1145
        %1176 = vmatprep.subr.mxu0 0.0
        %1177 = vmatpush1.msra.mxu0 %v1146
        %1178 = vmatprep.subr.mxu0 0.0
        %1179 = vmatpush1.msra.mxu0 %v1147
        %1180 = vmatprep.subr.mxu0 0.0
        %1181 = vmatpush1.msra.mxu0 0.0
        %1182 = vmatprep.subr.mxu0 0.0
        %1183 = vmatpush1.msra.mxu0 0.0
        %1184 = vmatprep.subr.mxu0 0.0
        %1185 = vmatpush1.msra.mxu0 0.0
        %1186 = vmatprep.subr.mxu0 0.0
        %1187 = vmatpush1.msra.mxu0 0.0
        %1188 = vmatprep.subr.mxu0 0.0
        %1189 = vmatpush1.msra.mxu0 0.0
        %1190 = vmatprep.subr.mxu0 0.0
        %1191 = vmatpush1.msra.mxu0 0.0
        %1192 = vmatprep.subr.mxu0 0.0
        %1193 = vmatpush1.msra.mxu0 0.0
        %1194 = vmatprep.subr.mxu0 0.0
        %1195 = vmatpush1.msra.mxu0 0.0
        %1196 = vmatprep.subr.mxu0 0.0
        %1197 = vmatpush1.msra.mxu0 0.0
        %1198 = vmatprep.subr.mxu0 0.0
        %1199 = vmatpush1.msra.mxu0 0.0
        %1200 = vmatprep.subr.mxu0 0.0
        %1201 = vmatpush1.msra.mxu0 0.0
        %1202 = vmatprep.subr.mxu0 0.0
        %1203 = vmatpush1.msra.mxu0 0.0
        %1204 = vmatprep.subr.mxu0 0.0
        %1205 = vmatpush1.msra.mxu0 0.0
        %1206 = vmatprep.subr.mxu0 0.0
        %1207 = vmatpush1.msra.mxu0 0.0
        %1208 = vmatprep.subr.mxu0 0.0
        %1209 = vmatpush1.msra.mxu0 0.0
        %1210 = vmatprep.subr.mxu0 0.0
        %1211 = vmatpush1.msra.mxu0 0.0
        %1212 = vmatprep.mubr.f32.mxu0 0.0
        %1213 = vmatmul.mubr.f32.gmra.mrb[0].mxu0 %v1127
        %v1214 = vpop.f32.mrb[0].mxu0
        %v1215 = vadd.f32 0.0, %v1214
        %v1216 = vpop.f32.mrb[0].mxu0
        %1217 = vdwg.mxu0
        %v1218 = vadd.f32 %v1104, %v1215
        %v1219 = vld [vmem:[#allocation8] sm:$0xff]
        %v1220 = vld [vmem:[#allocation8 + $0x8] sm:$0xff]
        %v1221 = vld [vmem:[#allocation8 + $0x10] sm:$0xff]
        %v1222 = vld [vmem:[#allocation8 + $0x18] sm:$0xff]
        %v1223 = vld [vmem:[#allocation8 + $0x20] sm:$0xff]
        %v1224 = vld [vmem:[#allocation8 + $0x28] sm:$0xff]
        %v1225 = vld [vmem:[#allocation8 + $0x30] sm:$0xff]
        %v1226 = vld [vmem:[#allocation8 + $0x38] sm:$0xff]
        %v1227 = vld [vmem:[#allocation8 + $0x40] sm:$0xff]
        %v1228 = vld [vmem:[#allocation8 + $0x48] sm:$0xff]
        %v1229 = vld [vmem:[#allocation8 + $0x50] sm:$0xff]
        %v1230 = vld [vmem:[#allocation8 + $0x58] sm:$0xff]
        %v1231 = vld [vmem:[#allocation8 + $0x60] sm:$0xff]
        %v1232 = vld [vmem:[#allocation8 + $0x68] sm:$0xff]
        %v1233 = vld [vmem:[#allocation8 + $0x70] sm:$0xff]
        %v1234 = vld [vmem:[#allocation8 + $0x78] sm:$0xff]
        %1235 = vmatprep.subr.mxu0 0.0
        %1236 = vmatpush1.msra.mxu0 %v1219
        %1237 = vmatprep.subr.mxu0 0.0
        %1238 = vmatpush1.msra.mxu0 %v1220
        %1239 = vmatprep.subr.mxu0 0.0
        %1240 = vmatpush1.msra.mxu0 %v1221
        %1241 = vmatprep.subr.mxu0 0.0
        %1242 = vmatpush1.msra.mxu0 %v1222
        %1243 = vmatprep.subr.mxu0 0.0
        %1244 = vmatpush1.msra.mxu0 %v1223
        %1245 = vmatprep.subr.mxu0 0.0
        %1246 = vmatpush1.msra.mxu0 %v1224
        %1247 = vmatprep.subr.mxu0 0.0
        %1248 = vmatpush1.msra.mxu0 %v1225
        %1249 = vmatprep.subr.mxu0 0.0
        %1250 = vmatpush1.msra.mxu0 %v1226
        %1251 = vmatprep.subr.mxu0 0.0
        %1252 = vmatpush1.msra.mxu0 %v1227
        %1253 = vmatprep.subr.mxu0 0.0
        %1254 = vmatpush1.msra.mxu0 %v1228
        %1255 = vmatprep.subr.mxu0 0.0
        %1256 = vmatpush1.msra.mxu0 %v1229
        %1257 = vmatprep.subr.mxu0 0.0
        %1258 = vmatpush1.msra.mxu0 %v1230
        %1259 = vmatprep.subr.mxu0 0.0
        %1260 = vmatpush1.msra.mxu0 %v1231
        %1261 = vmatprep.subr.mxu0 0.0
        %1262 = vmatpush1.msra.mxu0 %v1232
        %1263 = vmatprep.subr.mxu0 0.0
        %1264 = vmatpush1.msra.mxu0 %v1233
        %1265 = vmatprep.subr.mxu0 0.0
        %1266 = vmatpush1.msra.mxu0 %v1234
        %1267 = vmatprep.subr.mxu0 0.0
        %1268 = vmatpush1.msra.mxu0 0.0
        %1269 = vmatprep.subr.mxu0 0.0
        %1270 = vmatpush1.msra.mxu0 0.0
        %1271 = vmatprep.subr.mxu0 0.0
        %1272 = vmatpush1.msra.mxu0 0.0
        %1273 = vmatprep.subr.mxu0 0.0
        %1274 = vmatpush1.msra.mxu0 0.0
        %1275 = vmatprep.subr.mxu0 0.0
        %1276 = vmatpush1.msra.mxu0 0.0
        %1277 = vmatprep.subr.mxu0 0.0
        %1278 = vmatpush1.msra.mxu0 0.0
        %1279 = vmatprep.subr.mxu0 0.0
        %1280 = vmatpush1.msra.mxu0 0.0
        %1281 = vmatprep.subr.mxu0 0.0
        %1282 = vmatpush1.msra.mxu0 0.0
        %1283 = vmatprep.subr.mxu0 0.0
        %1284 = vmatpush1.msra.mxu0 0.0
        %1285 = vmatprep.subr.mxu0 0.0
        %1286 = vmatpush1.msra.mxu0 0.0
        %1287 = vmatprep.subr.mxu0 0.0
        %1288 = vmatpush1.msra.mxu0 0.0
        %1289 = vmatprep.subr.mxu0 0.0
        %1290 = vmatpush1.msra.mxu0 0.0
        %1291 = vmatprep.subr.mxu0 0.0
        %1292 = vmatpush1.msra.mxu0 0.0
        %1293 = vmatprep.subr.mxu0 0.0
        %1294 = vmatpush1.msra.mxu0 0.0
        %1295 = vmatprep.subr.mxu0 0.0
        %1296 = vmatpush1.msra.mxu0 0.0
        %1297 = vmatprep.subr.mxu0 0.0
        %1298 = vmatpush1.msra.mxu0 0.0
        %1299 = vmatprep.mubr.f32.mxu0 0.0
        %1300 = vmatmul.mubr.f32.gmra.mrb[0].mxu0 %v1131
        %v1301 = vpop.f32.mrb[0].mxu0
        %v1302 = vadd.f32 0.0, %v1301
        %v1303 = vpop.f32.mrb[0].mxu0
        %1304 = vdwg.mxu0
        %v1305 = vadd.f32 %v1218, %v1302
        %v1306 = vxor.u32 %v1305, 2147483648
        %v1307 = vmul.f32 %v1306, 1.442695
        %v1308 = vpow.pop %v1307
        %v1309 = vadd.f32 %v1308, 1.0
        %v1310 = vrcp.pop %v1309
        %v1311 = vmul.f32 1.0, %v1310
        %v1312 = vand.u32 2147483647, %v1123
        %v1313 = vadd.f32 %v1312, 1.0
        %v1314 = vrcp.pop %v1313
        %v1315 = vmul.f32 %v1123, %v1314
        %v1316 = vmul.f32 %v1311, %v1315
        %1317 = vst [vmem:[#allocation2] sm:$0xff] %v1316
        %1318 = vst [vmem:[#allocation2 + $0x8] sm:$0xff] %v1123
        %1319 = vst [vmem:[#allocation2 + $0x10] sm:$0xff] %v1127
        %1320 = vst [vmem:[#allocation2 + $0x18] sm:$0xff] %v1131
        %v1321 = vld [vmem:[#allocation2] sm:$0xff]
        %v1322 = vld [vmem:[#allocation2 + $0x8] sm:$0xff]
        %v1323 = vld [vmem:[#allocation2 + $0x10] sm:$0xff]
        %v1324 = vld [vmem:[#allocation2 + $0x18] sm:$0xff]
        %1325 = vst [vmem:[%s261] sm:$0xff] %v1321
        %1326 = vst [vmem:[%s261 + $0x8] sm:$0xff] %v1322
        %1327 = vst [vmem:[%s261 + $0x10] sm:$0xff] %v1323
        %1328 = vst [vmem:[%s261 + $0x18] sm:$0xff] %v1324
        %s1329 = sand.u32 %s139, 1
        %s1330 = scalar_lea.sflag [#allocation5], %s1329
        %s1331 = sand.u32 %s139, 1
        %s1332 = smul.addr %s1331, 32
        %s1333 = scalar_lea.vmem [#allocation9], %s1332
        // Predicated region
        $region57: #{trace_lstm_seq.1} parent=39 // pred_check
          %p1334 = pneg %p149
        $region58: #{trace_lstm_seq.1} parent=39 // pred_check_branch
          %1336 = sbr.rel (%p1334) target = $region60
        $region59: #{trace_lstm_seq.1} parent=39 // pred_region
          %s1338 = ssub.s32 512, 512
          %1339 = vsyncadd %s1330, %s1338
          %s1340 = smul.addr %s21, 4
          %s1341 = smul.addr %s1340, 128
          %s1342 = scalar_lea.hbm %s5, %s1341
          %s1344 = sshll.u32 %s1333, 4
          %s1345 = int_to_ptr.vmem [resolvable:$true] %s1344
          %1347 = dma.vmem_to_hbm [thread:$0]  %s1345, 512, %s1342, %s1330
        $region60: #{trace_lstm_seq.1} parent=39 // pred_fallthru
          _
      $region40: #{trace_lstm_seq.1} parent=5 // pred_fallthru
        _
      %p1348 = scmp.le.s32.totalorder 2, %s16
      // Predicated region
      $region61: #{trace_lstm_seq.1} parent=5 // pred_check
        %p1349 = pneg %p1348
      $region62: #{trace_lstm_seq.1} parent=5 // pred_check_branch
        %1351 = sbr.rel (%p1349) target = $region64
      $region63: #{trace_lstm_seq.1} parent=5 // pred_region
        %s1352 = ssub.s32 %s16, 2
        // Predicated region
        $region65: #{trace_lstm_seq.1} parent=63 // pred_check
          %p1353 = pneg %p155
        $region66: #{trace_lstm_seq.1} parent=63 // pred_check_branch
          %1355 = sbr.rel (%p1353) target = $region68
        $region67: #{trace_lstm_seq.1} parent=63 // pred_region
          %s1356 = sand.u32 %s140, 1
          %s1357 = scalar_lea.sflag [#allocation5], %s1356
          %s1358 = sand.u32 %s140, 1
          %s1359 = smul.addr %s1358, 32
          %s1360 = scalar_lea.vmem [#allocation9], %s1359
          %1361 = dma.done %s1357, 512
        $region68: #{trace_lstm_seq.1} parent=63 // pred_fallthru
          _
      $region64: #{trace_lstm_seq.1} parent=5 // pred_fallthru
        _
    $region6: #{trace_lstm_seq.1} parent=1 // loop_footer
      %s20 = sadd.s32 1, %s16
    $region7: #{trace_lstm_seq.1} parent=1 // loop_footer_branch
      %15 = sbr.rel target = $region3
    $region8: #{trace_lstm_seq.1} parent=1 // loop_exit
      _
    %1362 = vsyncpa [#allocation4], 1
    %s1363 = scalar_lea.sflag [#allocation4], 1
    %1364 = vsyncpa %s1363, 1
    %1365 = vsyncpa [#allocation7], 1
    %1366 = vsyncpa [#allocation5], 1
    %s1367 = scalar_lea.sflag [#allocation5], 1
    %1368 = vsyncpa %s1367, 1

</llo_original>
